<compile_context>
chip_gen: v5e
topology: v5e:2x2
jax: 0.10.0
libtpu: 0.0.40
codegen_flags: <defaults>
</compile_context>

<pallas_src>
import functools
import math

import jax
import jax.numpy as jnp
from jax.experimental import pallas as pl
from jax.experimental.pallas import tpu as pltpu


# ----------------------------- in-kernel helpers -----------------------------

def _layernorm(x, gamma, beta, eps=1e-12):
    # matches the custom SASRec LayerNorm: (x-u)/sqrt(var+eps)*w + b  (f32)
    u = jnp.mean(x, axis=-1, keepdims=True)
    s = jnp.mean((x - u) ** 2, axis=-1, keepdims=True)
    xn = (x - u) * jax.lax.rsqrt(s + eps)
    return xn * gamma + beta


def _gelu(x):
    # exact erf-based gelu (as in the reference SASRec code)
    return x * 0.5 * (1.0 + jax.lax.erf(x / math.sqrt(2.0)))


# ------------------------------ fused kernel ----------------------------------

def encoder_stack_kernel(x0_ref, pad_ref, ln_eg_ref, ln_eb_ref,
                         wqkv_ref, bqkv_ref, wo_ref, bo_ref,
                         ln1g_ref, ln1b_ref,
                         w1_ref, b1_ref, w2_ref, b2_ref,
                         ln2g_ref, ln2b_ref,
                         o_ref, x_carry, *, num_heads):
    tb, L, H = x0_ref.shape
    nh = num_heads
    dh = H // nh
    scale = 1.0 / math.sqrt(dh)
    layer = pl.program_id(1)

    # ---- layer 0: fused (item_emb + pos_emb) LayerNorm into the VMEM carry ----
    @pl.when(layer == 0)
    def _():
        x_carry[...] = _layernorm(x0_ref[...], ln_eg_ref[...], ln_eb_ref[...])

    # ---- additive attention mask, built in-kernel from the pad vector ----
    rows = jax.lax.broadcasted_iota(jnp.int32, (L, L), 0)
    cols = jax.lax.broadcasted_iota(jnp.int32, (L, L), 1)
    causal = (rows >= cols).astype(jnp.float32)                # (L, L)
    ext = pad_ref[...] * causal[None, :, :]                    # (tb, L, L)
    mask = (1.0 - ext) * -10000.0

    x = x_carry[...]                                           # (tb, L, H) f32
    R = tb * L
    xf = x.reshape(R, H)
    xb = xf.astype(jnp.bfloat16)

    # ---- fused QKV projection: one (R, H) x (H, 3H) matmul ----
    qkv = jnp.dot(xb, wqkv_ref[0],
                  preferred_element_type=jnp.float32) + bqkv_ref[0]   # (R, 3H) f32
    qkv_b = qkv.astype(jnp.bfloat16)

    # ---- multi-head attention: rows batched via leading-batch einsums ----
    ctx_parts = []
    for h in range(nh):                                        # short static loop
        q_h = qkv_b[:, 0 * H + h * dh: 0 * H + (h + 1) * dh].reshape(tb, L, dh)
        k_h = qkv_b[:, 1 * H + h * dh: 1 * H + (h + 1) * dh].reshape(tb, L, dh)
        v_h = qkv_b[:, 2 * H + h * dh: 2 * H + (h + 1) * dh].reshape(tb, L, dh)
        s = jnp.einsum('bqd,bkd->bqk', q_h, k_h,
                       preferred_element_type=jnp.float32) * scale + mask
        s = s - jnp.max(s, axis=-1, keepdims=True)
        p = jnp.exp(s)
        p = p * pl.reciprocal(jnp.sum(p, axis=-1, keepdims=True), approx=True)
        ctx_h = jnp.einsum('bqk,bkd->bqd', p.astype(jnp.bfloat16), v_h,
                           preferred_element_type=jnp.float32)
        ctx_parts.append(ctx_h.reshape(R, dh))
    ctx = jnp.concatenate(ctx_parts, axis=-1) if nh > 1 else ctx_parts[0]

    # ---- output projection + residual LayerNorm ----
    attn = jnp.dot(ctx.astype(jnp.bfloat16), wo_ref[0],
                   preferred_element_type=jnp.float32) + bo_ref[0]
    h1 = _layernorm(attn + xf, ln1g_ref[0], ln1b_ref[0])       # (R, H) f32

    # ---- feed-forward (gelu) + residual LayerNorm ----
    ff = jnp.dot(h1.astype(jnp.bfloat16), w1_ref[0],
                 preferred_element_type=jnp.float32) + b1_ref[0]
    ff = _gelu(ff)
    ff = jnp.dot(ff.astype(jnp.bfloat16), w2_ref[0],
                 preferred_element_type=jnp.float32) + b2_ref[0]
    x_new = _layernorm(ff + h1, ln2g_ref[0], ln2b_ref[0]).reshape(tb, L, H)

    x_carry[...] = x_new                                       # stays in VMEM

    @pl.when(layer == pl.num_programs(1) - 1)
    def _():
        o_ref[...] = x_new


# ------------------------------ wrapper ----------------------------------------

def _pick_batch_tile(B, L, target_rows=256):
    """Largest divisor of B whose row count (tb*L) stays near the MXU target."""
    best = 1
    for tb in range(1, B + 1):
        if B % tb == 0 and (tb * L <= target_rows or tb == 1):
            best = tb
    return best


def sasrec_forward(input_ids, params, *, num_heads):
    B, L = input_ids.shape
    H = params["pos_emb"].shape[-1]
    num_layers = params["wqkv"].shape[0]
    assert H % num_heads == 0, "hidden_size must be divisible by num_heads"

    # ----- cheap glue (plain JAX): pad vector + embedding gather -----
    pad = (input_ids > 0).astype(jnp.float32).reshape(B, 1, L)
    item = jnp.take(params["item_emb"], input_ids, axis=0)      # (B, L, H) f32
    x0 = item + params["pos_emb"][None, :, :]                   # args.pe == True

    tb = _pick_batch_tile(B, L)
    grid = (B // tb, num_layers)

    kernel = functools.partial(encoder_stack_kernel, num_heads=num_heads)
    wspec = lambda shape: pl.BlockSpec(shape, lambda b, l: (l, 0, 0))

    return pl.pallas_call(
        kernel,
        out_shape=jax.ShapeDtypeStruct((B, L, H), jnp.float32),
        grid=grid,
        in_specs=[
            pl.BlockSpec((tb, L, H), lambda b, l: (b, 0, 0)),   # item+pos emb (pre-LN)
            pl.BlockSpec((tb, 1, L), lambda b, l: (b, 0, 0)),   # pad vector
            pl.BlockSpec((1, H), lambda b, l: (0, 0)),          # emb LN gamma
            pl.BlockSpec((1, H), lambda b, l: (0, 0)),          # emb LN beta
            wspec((1, H, 3 * H)),                               # wqkv (bf16)
            wspec((1, 1, 3 * H)),                               # bqkv
            wspec((1, H, H)),                                   # wo   (bf16)
            wspec((1, 1, H)),                                   # bo
            wspec((1, 1, H)),                                   # ln1 gamma
            wspec((1, 1, H)),                                   # ln1 beta
            wspec((1, H, 4 * H)),                               # w1   (bf16)
            wspec((1, 1, 4 * H)),                               # b1
            wspec((1, 4 * H, H)),                               # w2   (bf16)
            wspec((1, 1, H)),                                   # b2
            wspec((1, 1, H)),                                   # ln2 gamma
            wspec((1, 1, H)),                                   # ln2 beta
        ],
        out_specs=pl.BlockSpec((tb, L, H), lambda b, l: (b, 0, 0)),
        scratch_shapes=[pltpu.VMEM((tb, L, H), jnp.float32)],   # layer-to-layer carry
        compiler_params=pltpu.CompilerParams(
            dimension_semantics=("parallel", "arbitrary")),
    )(x0, pad,
      params["ln_emb_g"], params["ln_emb_b"],
      params["wqkv"], params["bqkv"], params["wo"], params["bo"],
      params["ln1_g"], params["ln1_b"],
      params["w1"], params["b1"], params["w2"], params["b2"],
      params["ln2_g"], params["ln2_b"])


# ------------------------------ param setup -----------------------------------

def init_params(key, *, item_size, max_seq_length, hidden_size, num_layers,
                initializer_range=0.02, weight_dtype=jnp.bfloat16):
    H = hidden_size
    keys = iter(jax.random.split(key, 2 + num_layers * 4))
    nrm = lambda shape: (jax.random.normal(next(keys), shape, jnp.float32)
                         * initializer_range)

    item_emb = nrm((item_size, H))
    item_emb = item_emb.at[0].set(0.0)        # nn.Embedding(padding_idx=0)

    params = {
        "item_emb": item_emb,
        "pos_emb": nrm((max_seq_length, H)),
        "ln_emb_g": jnp.ones((1, H), jnp.float32),
        "ln_emb_b": jnp.zeros((1, H), jnp.float32),
    }

    wqkv, wo, w1, w2 = [], [], [], []
    for _ in range(num_layers):
        wqkv.append(nrm((H, 3 * H)))          # fused Q|K|V, stored (in, out)
        wo.append(nrm((H, H)))
        w1.append(nrm((H, 4 * H)))
        w2.append(nrm((4 * H, H)))

    params.update({
        "wqkv": jnp.stack(wqkv).astype(weight_dtype),
        "bqkv": jnp.zeros((num_layers, 1, 3 * H), jnp.float32),
        "wo": jnp.stack(wo).astype(weight_dtype),
        "bo": jnp.zeros((num_layers, 1, H), jnp.float32),
        "ln1_g": jnp.ones((num_layers, 1, H), jnp.float32),
        "ln1_b": jnp.zeros((num_layers, 1, H), jnp.float32),
        "w1": jnp.stack(w1).astype(weight_dtype),
        "b1": jnp.zeros((num_layers, 1, 4 * H), jnp.float32),
        "w2": jnp.stack(w2).astype(weight_dtype),
        "b2": jnp.zeros((num_layers, 1, H), jnp.float32),
        "ln2_g": jnp.ones((num_layers, 1, H), jnp.float32),
        "ln2_b": jnp.zeros((num_layers, 1, H), jnp.float32),
    })
    return params


# ---------------------------------- main --------------------------------------

if __name__ == "__main__":
    B, L, H = 2, 8, 32
    ITEM_SIZE = 50
    NUM_LAYERS = 2
    NUM_HEADS = 2

    key = jax.random.PRNGKey(0)
    k_params, k_ids = jax.random.split(key)

    params = init_params(k_params, item_size=ITEM_SIZE, max_seq_length=L,
                         hidden_size=H, num_layers=NUM_LAYERS)

    # deterministic input_ids with some padding (0) at the front of each row
    input_ids = jax.random.randint(k_ids, (B, L), 1, ITEM_SIZE, dtype=jnp.int32)
    pad_pattern = jnp.array([[0, 0, 1, 1, 1, 1, 1, 1],
                             [0, 1, 1, 1, 1, 1, 1, 1]], dtype=jnp.int32)
    input_ids = input_ids * pad_pattern

    out = sasrec_forward(input_ids, params, num_heads=NUM_HEADS)
    out = jax.block_until_ready(out)
    assert out.shape == (B, L, H) and out.dtype == jnp.float32
    print("KERNEL_OK")
</pallas_src>

<mosaic_0001>
module attributes {stable_mosaic.version = 11 : i64} {
  func.func @encoder_stack_kernel(%arg0: i32, %arg1: i32, %arg2: memref<2x8x32xf32, #tpu.memory_space<vmem>>, %arg3: memref<2x1x8xf32, #tpu.memory_space<vmem>>, %arg4: memref<1x32xf32, #tpu.memory_space<vmem>>, %arg5: memref<1x32xf32, #tpu.memory_space<vmem>>, %arg6: memref<1x32x96xbf16, #tpu.memory_space<vmem>>, %arg7: memref<1x1x96xf32, #tpu.memory_space<vmem>>, %arg8: memref<1x32x32xbf16, #tpu.memory_space<vmem>>, %arg9: memref<1x1x32xf32, #tpu.memory_space<vmem>>, %arg10: memref<1x1x32xf32, #tpu.memory_space<vmem>>, %arg11: memref<1x1x32xf32, #tpu.memory_space<vmem>>, %arg12: memref<1x32x128xbf16, #tpu.memory_space<vmem>>, %arg13: memref<1x1x128xf32, #tpu.memory_space<vmem>>, %arg14: memref<1x128x32xbf16, #tpu.memory_space<vmem>>, %arg15: memref<1x1x32xf32, #tpu.memory_space<vmem>>, %arg16: memref<1x1x32xf32, #tpu.memory_space<vmem>>, %arg17: memref<1x1x32xf32, #tpu.memory_space<vmem>>, %arg18: memref<2x8x32xf32, #tpu.memory_space<vmem>>, %arg19: memref<2x8x32xf32, #tpu.memory_space<vmem>>) attributes {dimension_semantics = [#tpu.dimension_semantics<parallel>, #tpu.dimension_semantics<arbitrary>], iteration_bounds = array<i64: 1, 2>, scalar_prefetch = 0 : i64, scratch_operands = 1 : i64, tpu.core_type = #tpu.core_type<tc>, window_params = [{transform_indices = @transform_0, window_bounds = array<i64: 2, 8, 32>}, {transform_indices = @transform_1, window_bounds = array<i64: 2, 1, 8>}, {pipeline_mode = #tpu.pipeline_mode<synchronous>, transform_indices = @transform_2, window_bounds = array<i64: 1, 32>}, {pipeline_mode = #tpu.pipeline_mode<synchronous>, transform_indices = @transform_3, window_bounds = array<i64: 1, 32>}, {transform_indices = @transform_4, window_bounds = array<i64: 1, 32, 96>}, {transform_indices = @transform_5, window_bounds = array<i64: 1, 1, 96>}, {transform_indices = @transform_6, window_bounds = array<i64: 1, 32, 32>}, {transform_indices = @transform_7, window_bounds = array<i64: 1, 1, 32>}, {transform_indices = @transform_8, window_bounds = array<i64: 1, 1, 32>}, {transform_indices = @transform_9, window_bounds = array<i64: 1, 1, 32>}, {transform_indices = @transform_10, window_bounds = array<i64: 1, 32, 128>}, {transform_indices = @transform_11, window_bounds = array<i64: 1, 1, 128>}, {transform_indices = @transform_12, window_bounds = array<i64: 1, 128, 32>}, {transform_indices = @transform_13, window_bounds = array<i64: 1, 1, 32>}, {transform_indices = @transform_14, window_bounds = array<i64: 1, 1, 32>}, {transform_indices = @transform_15, window_bounds = array<i64: 1, 1, 32>}, {transform_indices = @transform_16, window_bounds = array<i64: 2, 8, 32>}]} {
    %c0_i32 = arith.constant 0 : i32
    %0 = arith.cmpi eq, %arg1, %c0_i32 : i32
    %1 = arith.extui %0 : i1 to i32
    %c0_i32_0 = arith.constant 0 : i32
    %2 = arith.cmpi ne, %1, %c0_i32_0 : i32
    scf.if %2 {
      %c0_74 = arith.constant 0 : index
      %c0_75 = arith.constant 0 : index
      %c0_76 = arith.constant 0 : index
      %166 = vector.load %arg2[%c0_74, %c0_75, %c0_76] : memref<2x8x32xf32, #tpu.memory_space<vmem>>, vector<2x8x32xf32>
      %c0_77 = arith.constant 0 : index
      %c0_78 = arith.constant 0 : index
      %167 = vector.load %arg4[%c0_77, %c0_78] : memref<1x32xf32, #tpu.memory_space<vmem>>, vector<1x32xf32>
      %c0_79 = arith.constant 0 : index
      %c0_80 = arith.constant 0 : index
      %168 = vector.load %arg5[%c0_79, %c0_80] : memref<1x32xf32, #tpu.memory_space<vmem>>, vector<1x32xf32>
      %cst_81 = arith.constant dense<0.000000e+00> : vector<2x8xf32>
      %169 = vector.multi_reduction <add>, %166, %cst_81 [2] : vector<2x8x32xf32> to vector<2x8xf32>
      %170 = vector.shape_cast %169 : vector<2x8xf32> to vector<2x8x1xf32>
      %cst_82 = arith.constant 3.200000e+01 : f32
      %171 = vector.broadcast %cst_82 : f32 to vector<2x8x1xf32>
      %172 = arith.divf %170, %171 : vector<2x8x1xf32>
      %173 = vector.broadcast %172 : vector<2x8x1xf32> to vector<2x8x32xf32>
      %174 = arith.subf %166, %173 : vector<2x8x32xf32>
      %175 = arith.mulf %174, %174 : vector<2x8x32xf32>
      %cst_83 = arith.constant dense<0.000000e+00> : vector<2x8xf32>
      %176 = vector.multi_reduction <add>, %175, %cst_83 [2] : vector<2x8x32xf32> to vector<2x8xf32>
      %177 = vector.shape_cast %176 : vector<2x8xf32> to vector<2x8x1xf32>
      %cst_84 = arith.constant 3.200000e+01 : f32
      %178 = vector.broadcast %cst_84 : f32 to vector<2x8x1xf32>
      %179 = arith.divf %177, %178 : vector<2x8x1xf32>
      %180 = vector.broadcast %172 : vector<2x8x1xf32> to vector<2x8x32xf32>
      %181 = arith.subf %166, %180 : vector<2x8x32xf32>
      %cst_85 = arith.constant 9.99999996E-13 : f32
      %182 = vector.broadcast %cst_85 : f32 to vector<2x8x1xf32>
      %183 = arith.addf %179, %182 : vector<2x8x1xf32>
      %184 = math.rsqrt %183 : vector<2x8x1xf32>
      %185 = vector.broadcast %184 : vector<2x8x1xf32> to vector<2x8x32xf32>
      %186 = arith.mulf %181, %185 : vector<2x8x32xf32>
      %187 = vector.shape_cast %167 : vector<1x32xf32> to vector<1x1x32xf32>
      %188 = vector.broadcast %187 : vector<1x1x32xf32> to vector<2x8x32xf32>
      %189 = arith.mulf %186, %188 : vector<2x8x32xf32>
      %190 = vector.shape_cast %168 : vector<1x32xf32> to vector<1x1x32xf32>
      %191 = vector.broadcast %190 : vector<1x1x32xf32> to vector<2x8x32xf32>
      %192 = arith.addf %189, %191 : vector<2x8x32xf32>
      %c0_86 = arith.constant 0 : index
      %c0_87 = arith.constant 0 : index
      %c0_88 = arith.constant 0 : index
      %193 = vector.load %arg19[%c0_86, %c0_87, %c0_88] : memref<2x8x32xf32, #tpu.memory_space<vmem>>, vector<2x8x32xf32>
      tpu.vector_store %arg19[%c0_86, %c0_87, %c0_88], %192 {strides = array<i32>} : memref<2x8x32xf32, #tpu.memory_space<vmem>>, vector<2x8x32xf32>,
    } else {
    }
    %3 = tpu.iota {dimensions = array<i32: 0>} : vector<8x8xi32>
    %4 = tpu.iota {dimensions = array<i32: 1>} : vector<8x8xi32>
    %5 = arith.cmpi sge, %3, %4 : vector<8x8xi32>
    %6 = arith.extui %5 : vector<8x8xi1> to vector<8x8xi32>
    %7 = arith.sitofp %6 : vector<8x8xi32> to vector<8x8xf32>
    %c0 = arith.constant 0 : index
    %c0_1 = arith.constant 0 : index
    %c0_2 = arith.constant 0 : index
    %8 = vector.load %arg3[%c0, %c0_1, %c0_2] : memref<2x1x8xf32, #tpu.memory_space<vmem>>, vector<2x1x8xf32>
    %9 = vector.shape_cast %7 : vector<8x8xf32> to vector<1x8x8xf32>
    %10 = vector.broadcast %8 : vector<2x1x8xf32> to vector<2x8x8xf32>
    %11 = vector.broadcast %9 : vector<1x8x8xf32> to vector<2x8x8xf32>
    %12 = arith.mulf %10, %11 : vector<2x8x8xf32>
    %cst = arith.constant 1.000000e+00 : f32
    %13 = vector.broadcast %cst : f32 to vector<2x8x8xf32>
    %14 = arith.subf %13, %12 : vector<2x8x8xf32>
    %cst_3 = arith.constant -1.000000e+04 : f32
    %15 = vector.broadcast %cst_3 : f32 to vector<2x8x8xf32>
    %16 = arith.mulf %14, %15 : vector<2x8x8xf32>
    %c0_4 = arith.constant 0 : index
    %c0_5 = arith.constant 0 : index
    %c0_6 = arith.constant 0 : index
    %17 = vector.load %arg19[%c0_4, %c0_5, %c0_6] : memref<2x8x32xf32, #tpu.memory_space<vmem>>, vector<2x8x32xf32>
    %18 = vector.shape_cast %17 : vector<2x8x32xf32> to vector<16x32xf32>
    %19 = arith.truncf %18 : vector<16x32xf32> to vector<16x32xbf16>
    %c0_7 = arith.constant 0 : index
    %c0_8 = arith.constant 0 : index
    %c0_9 = arith.constant 0 : index
    %20 = vector.load %arg6[%c0_7, %c0_8, %c0_9] : memref<1x32x96xbf16, #tpu.memory_space<vmem>>, vector<1x32x96xbf16>
    %21 = vector.shape_cast %20 : vector<1x32x96xbf16> to vector<32x96xbf16>
    %cst_10 = arith.constant dense<0.000000e+00> : vector<16x96xf32>
    %22 = tpu.matmul %19, %21, %cst_10 {dimension_numbers = #tpu.dot_dimension_numbers<[1], [0], [0], [1], [0, 0, 1, 1], [], []>} : vector<16x32xbf16>, vector<32x96xbf16>, vector<16x96xf32> -> vector<16x96xf32>
    %c0_11 = arith.constant 0 : index
    %c0_12 = arith.constant 0 : index
    %c0_13 = arith.constant 0 : index
    %23 = vector.load %arg7[%c0_11, %c0_12, %c0_13] : memref<1x1x96xf32, #tpu.memory_space<vmem>>, vector<1x1x96xf32>
    %24 = vector.shape_cast %23 : vector<1x1x96xf32> to vector<1x96xf32>
    %25 = vector.broadcast %24 : vector<1x96xf32> to vector<16x96xf32>
    %26 = arith.addf %22, %25 : vector<16x96xf32>
    %27 = arith.truncf %26 : vector<16x96xf32> to vector<16x96xbf16>
    %28 = vector.extract_strided_slice %27 {offsets = [0, 0], sizes = [16, 16], strides = [1, 1]} : vector<16x96xbf16> to vector<16x16xbf16>
    %29 = vector.shape_cast %28 : vector<16x16xbf16> to vector<2x8x16xbf16>
    %30 = vector.extract_strided_slice %27 {offsets = [0, 32], sizes = [16, 16], strides = [1, 1]} : vector<16x96xbf16> to vector<16x16xbf16>
    %31 = vector.shape_cast %30 : vector<16x16xbf16> to vector<2x8x16xbf16>
    %32 = vector.extract_strided_slice %27 {offsets = [0, 64], sizes = [16, 16], strides = [1, 1]} : vector<16x96xbf16> to vector<16x16xbf16>
    %33 = vector.shape_cast %32 : vector<16x16xbf16> to vector<2x8x16xbf16>
    "tpu.trace_start"() <{level = 10 : i32, message = "bqd,bkd->bqk"}> : () -> ()
    %cst_14 = arith.constant dense<0.000000e+00> : vector<2x8x8xf32>
    %34 = tpu.matmul %29, %31, %cst_14 {dimension_numbers = #tpu.dot_dimension_numbers<[2], [2], [1], [1], [0, 0, 0, 1, 1, 1], [0], [0]>} : vector<2x8x16xbf16>, vector<2x8x16xbf16>, vector<2x8x8xf32> -> vector<2x8x8xf32>
    "tpu.trace_stop"() : () -> ()
    %cst_15 = arith.constant 2.500000e-01 : f32
    %35 = vector.broadcast %cst_15 : f32 to vector<2x8x8xf32>
    %36 = arith.mulf %34, %35 : vector<2x8x8xf32>
    %37 = arith.addf %36, %16 : vector<2x8x8xf32>
    %cst_16 = arith.constant dense<0xFF800000> : vector<2x8xf32>
    %38 = vector.multi_reduction <maximumf>, %37, %cst_16 [2] : vector<2x8x8xf32> to vector<2x8xf32>
    %39 = vector.shape_cast %38 : vector<2x8xf32> to vector<2x8x1xf32>
    %40 = vector.broadcast %39 : vector<2x8x1xf32> to vector<2x8x8xf32>
    %41 = arith.subf %37, %40 : vector<2x8x8xf32>
    %42 = math.exp %41 : vector<2x8x8xf32>
    %cst_17 = arith.constant dense<0.000000e+00> : vector<2x8xf32>
    %43 = vector.multi_reduction <add>, %42, %cst_17 [2] : vector<2x8x8xf32> to vector<2x8xf32>
    %44 = vector.shape_cast %43 : vector<2x8xf32> to vector<2x8x1xf32>
    %45 = tpu.reciprocal %44 {approx = true} : vector<2x8x1xf32> -> vector<2x8x1xf32>
    %46 = vector.broadcast %45 : vector<2x8x1xf32> to vector<2x8x8xf32>
    %47 = arith.mulf %42, %46 : vector<2x8x8xf32>
    %48 = arith.truncf %47 : vector<2x8x8xf32> to vector<2x8x8xbf16>
    "tpu.trace_start"() <{level = 10 : i32, message = "bqk,bkd->bqd"}> : () -> ()
    %cst_18 = arith.constant dense<0.000000e+00> : vector<2x8x16xf32>
    %49 = tpu.matmul %48, %33, %cst_18 {dimension_numbers = #tpu.dot_dimension_numbers<[2], [1], [1], [2], [0, 0, 0, 1, 1, 2], [0], [0]>} : vector<2x8x8xbf16>, vector<2x8x16xbf16>, vector<2x8x16xf32> -> vector<2x8x16xf32>
    "tpu.trace_stop"() : () -> ()
    %50 = vector.shape_cast %49 : vector<2x8x16xf32> to vector<16x16xf32>
    %51 = vector.extract_strided_slice %27 {offsets = [0, 16], sizes = [16, 16], strides = [1, 1]} : vector<16x96xbf16> to vector<16x16xbf16>
    %52 = vector.shape_cast %51 : vector<16x16xbf16> to vector<2x8x16xbf16>
    %53 = vector.extract_strided_slice %27 {offsets = [0, 48], sizes = [16, 16], strides = [1, 1]} : vector<16x96xbf16> to vector<16x16xbf16>
    %54 = vector.shape_cast %53 : vector<16x16xbf16> to vector<2x8x16xbf16>
    %55 = vector.extract_strided_slice %27 {offsets = [0, 80], sizes = [16, 16], strides = [1, 1]} : vector<16x96xbf16> to vector<16x16xbf16>
    %56 = vector.shape_cast %55 : vector<16x16xbf16> to vector<2x8x16xbf16>
    "tpu.trace_start"() <{level = 10 : i32, message = "bqd,bkd->bqk"}> : () -> ()
    %cst_19 = arith.constant dense<0.000000e+00> : vector<2x8x8xf32>
    %57 = tpu.matmul %52, %54, %cst_19 {dimension_numbers = #tpu.dot_dimension_numbers<[2], [2], [1], [1], [0, 0, 0, 1, 1, 1], [0], [0]>} : vector<2x8x16xbf16>, vector<2x8x16xbf16>, vector<2x8x8xf32> -> vector<2x8x8xf32>
    "tpu.trace_stop"() : () -> ()
    %cst_20 = arith.constant 2.500000e-01 : f32
    %58 = vector.broadcast %cst_20 : f32 to vector<2x8x8xf32>
    %59 = arith.mulf %57, %58 : vector<2x8x8xf32>
    %60 = arith.addf %59, %16 : vector<2x8x8xf32>
    %cst_21 = arith.constant dense<0xFF800000> : vector<2x8xf32>
    %61 = vector.multi_reduction <maximumf>, %60, %cst_21 [2] : vector<2x8x8xf32> to vector<2x8xf32>
    %62 = vector.shape_cast %61 : vector<2x8xf32> to vector<2x8x1xf32>
    %63 = vector.broadcast %62 : vector<2x8x1xf32> to vector<2x8x8xf32>
    %64 = arith.subf %60, %63 : vector<2x8x8xf32>
    %65 = math.exp %64 : vector<2x8x8xf32>
    %cst_22 = arith.constant dense<0.000000e+00> : vector<2x8xf32>
    %66 = vector.multi_reduction <add>, %65, %cst_22 [2] : vector<2x8x8xf32> to vector<2x8xf32>
    %67 = vector.shape_cast %66 : vector<2x8xf32> to vector<2x8x1xf32>
    %68 = tpu.reciprocal %67 {approx = true} : vector<2x8x1xf32> -> vector<2x8x1xf32>
    %69 = vector.broadcast %68 : vector<2x8x1xf32> to vector<2x8x8xf32>
    %70 = arith.mulf %65, %69 : vector<2x8x8xf32>
    %71 = arith.truncf %70 : vector<2x8x8xf32> to vector<2x8x8xbf16>
    "tpu.trace_start"() <{level = 10 : i32, message = "bqk,bkd->bqd"}> : () -> ()
    %cst_23 = arith.constant dense<0.000000e+00> : vector<2x8x16xf32>
    %72 = tpu.matmul %71, %56, %cst_23 {dimension_numbers = #tpu.dot_dimension_numbers<[2], [1], [1], [2], [0, 0, 0, 1, 1, 2], [0], [0]>} : vector<2x8x8xbf16>, vector<2x8x16xbf16>, vector<2x8x16xf32> -> vector<2x8x16xf32>
    "tpu.trace_stop"() : () -> ()
    %73 = vector.shape_cast %72 : vector<2x8x16xf32> to vector<16x16xf32>
    %74 = tpu.concatenate %50, %73 in 1 : vector<16x16xf32>, vector<16x16xf32> -> vector<16x32xf32>
    %75 = arith.truncf %74 : vector<16x32xf32> to vector<16x32xbf16>
    %c0_24 = arith.constant 0 : index
    %c0_25 = arith.constant 0 : index
    %c0_26 = arith.constant 0 : index
    %76 = vector.load %arg8[%c0_24, %c0_25, %c0_26] : memref<1x32x32xbf16, #tpu.memory_space<vmem>>, vector<1x32x32xbf16>
    %77 = vector.shape_cast %76 : vector<1x32x32xbf16> to vector<32x32xbf16>
    %cst_27 = arith.constant dense<0.000000e+00> : vector<16x32xf32>
    %78 = tpu.matmul %75, %77, %cst_27 {dimension_numbers = #tpu.dot_dimension_numbers<[1], [0], [0], [1], [0, 0, 1, 1], [], []>} : vector<16x32xbf16>, vector<32x32xbf16>, vector<16x32xf32> -> vector<16x32xf32>
    %c0_28 = arith.constant 0 : index
    %c0_29 = arith.constant 0 : index
    %c0_30 = arith.constant 0 : index
    %79 = vector.load %arg9[%c0_28, %c0_29, %c0_30] : memref<1x1x32xf32, #tpu.memory_space<vmem>>, vector<1x1x32xf32>
    %80 = vector.shape_cast %79 : vector<1x1x32xf32> to vector<1x32xf32>
    %81 = vector.broadcast %80 : vector<1x32xf32> to vector<16x32xf32>
    %82 = arith.addf %78, %81 : vector<16x32xf32>
    %83 = arith.addf %82, %18 : vector<16x32xf32>
    %c0_31 = arith.constant 0 : index
    %c0_32 = arith.constant 0 : index
    %c0_33 = arith.constant 0 : index
    %84 = vector.load %arg10[%c0_31, %c0_32, %c0_33] : memref<1x1x32xf32, #tpu.memory_space<vmem>>, vector<1x1x32xf32>
    %85 = vector.shape_cast %84 : vector<1x1x32xf32> to vector<1x32xf32>
    %c0_34 = arith.constant 0 : index
    %c0_35 = arith.constant 0 : index
    %c0_36 = arith.constant 0 : index
    %86 = vector.load %arg11[%c0_34, %c0_35, %c0_36] : memref<1x1x32xf32, #tpu.memory_space<vmem>>, vector<1x1x32xf32>
    %87 = vector.shape_cast %86 : vector<1x1x32xf32> to vector<1x32xf32>
    %cst_37 = arith.constant dense<0.000000e+00> : vector<16xf32>
    %88 = vector.multi_reduction <add>, %83, %cst_37 [1] : vector<16x32xf32> to vector<16xf32>
    %89 = vector.shape_cast %88 : vector<16xf32> to vector<16x1xf32>
    %cst_38 = arith.constant 3.200000e+01 : f32
    %90 = vector.broadcast %cst_38 : f32 to vector<16x1xf32>
    %91 = arith.divf %89, %90 : vector<16x1xf32>
    %92 = vector.broadcast %91 : vector<16x1xf32> to vector<16x32xf32>
    %93 = arith.subf %83, %92 : vector<16x32xf32>
    %94 = arith.mulf %93, %93 : vector<16x32xf32>
    %cst_39 = arith.constant dense<0.000000e+00> : vector<16xf32>
    %95 = vector.multi_reduction <add>, %94, %cst_39 [1] : vector<16x32xf32> to vector<16xf32>
    %96 = vector.shape_cast %95 : vector<16xf32> to vector<16x1xf32>
    %cst_40 = arith.constant 3.200000e+01 : f32
    %97 = vector.broadcast %cst_40 : f32 to vector<16x1xf32>
    %98 = arith.divf %96, %97 : vector<16x1xf32>
    %99 = vector.broadcast %91 : vector<16x1xf32> to vector<16x32xf32>
    %100 = arith.subf %83, %99 : vector<16x32xf32>
    %cst_41 = arith.constant 9.99999996E-13 : f32
    %101 = vector.broadcast %cst_41 : f32 to vector<16x1xf32>
    %102 = arith.addf %98, %101 : vector<16x1xf32>
    %103 = math.rsqrt %102 : vector<16x1xf32>
    %104 = vector.broadcast %103 : vector<16x1xf32> to vector<16x32xf32>
    %105 = arith.mulf %100, %104 : vector<16x32xf32>
    %106 = vector.broadcast %85 : vector<1x32xf32> to vector<16x32xf32>
    %107 = arith.mulf %105, %106 : vector<16x32xf32>
    %108 = vector.broadcast %87 : vector<1x32xf32> to vector<16x32xf32>
    %109 = arith.addf %107, %108 : vector<16x32xf32>
    %110 = arith.truncf %109 : vector<16x32xf32> to vector<16x32xbf16>
    %c0_42 = arith.constant 0 : index
    %c0_43 = arith.constant 0 : index
    %c0_44 = arith.constant 0 : index
    %111 = vector.load %arg12[%c0_42, %c0_43, %c0_44] : memref<1x32x128xbf16, #tpu.memory_space<vmem>>, vector<1x32x128xbf16>
    %112 = vector.shape_cast %111 : vector<1x32x128xbf16> to vector<32x128xbf16>
    %cst_45 = arith.constant dense<0.000000e+00> : vector<16x128xf32>
    %113 = tpu.matmul %110, %112, %cst_45 {dimension_numbers = #tpu.dot_dimension_numbers<[1], [0], [0], [1], [0, 0, 1, 1], [], []>} : vector<16x32xbf16>, vector<32x128xbf16>, vector<16x128xf32> -> vector<16x128xf32>
    %c0_46 = arith.constant 0 : index
    %c0_47 = arith.constant 0 : index
    %c0_48 = arith.constant 0 : index
    %114 = vector.load %arg13[%c0_46, %c0_47, %c0_48] : memref<1x1x128xf32, #tpu.memory_space<vmem>>, vector<1x1x128xf32>
    %115 = vector.shape_cast %114 : vector<1x1x128xf32> to vector<1x128xf32>
    %116 = vector.broadcast %115 : vector<1x128xf32> to vector<16x128xf32>
    %117 = arith.addf %113, %116 : vector<16x128xf32>
    %cst_49 = arith.constant 5.000000e-01 : f32
    %118 = vector.broadcast %cst_49 : f32 to vector<16x128xf32>
    %119 = arith.mulf %117, %118 : vector<16x128xf32>
    %cst_50 = arith.constant 1.41421354 : f32
    %120 = vector.broadcast %cst_50 : f32 to vector<16x128xf32>
    %121 = arith.divf %117, %120 : vector<16x128xf32>
    %122 = math.erf %121 : vector<16x128xf32>
    %cst_51 = arith.constant 1.000000e+00 : f32
    %123 = vector.broadcast %cst_51 : f32 to vector<16x128xf32>
    %124 = arith.addf %123, %122 : vector<16x128xf32>
    %125 = arith.mulf %119, %124 : vector<16x128xf32>
    %126 = arith.truncf %125 : vector<16x128xf32> to vector<16x128xbf16>
    %c0_52 = arith.constant 0 : index
    %c0_53 = arith.constant 0 : index
    %c0_54 = arith.constant 0 : index
    %127 = vector.load %arg14[%c0_52, %c0_53, %c0_54] : memref<1x128x32xbf16, #tpu.memory_space<vmem>>, vector<1x128x32xbf16>
    %128 = vector.shape_cast %127 : vector<1x128x32xbf16> to vector<128x32xbf16>
    %cst_55 = arith.constant dense<0.000000e+00> : vector<16x32xf32>
    %129 = tpu.matmul %126, %128, %cst_55 {dimension_numbers = #tpu.dot_dimension_numbers<[1], [0], [0], [1], [0, 0, 1, 1], [], []>} : vector<16x128xbf16>, vector<128x32xbf16>, vector<16x32xf32> -> vector<16x32xf32>
    %c0_56 = arith.constant 0 : index
    %c0_57 = arith.constant 0 : index
    %c0_58 = arith.constant 0 : index
    %130 = vector.load %arg15[%c0_56, %c0_57, %c0_58] : memref<1x1x32xf32, #tpu.memory_space<vmem>>, vector<1x1x32xf32>
    %131 = vector.shape_cast %130 : vector<1x1x32xf32> to vector<1x32xf32>
    %132 = vector.broadcast %131 : vector<1x32xf32> to vector<16x32xf32>
    %133 = arith.addf %129, %132 : vector<16x32xf32>
    %134 = arith.addf %133, %109 : vector<16x32xf32>
    %c0_59 = arith.constant 0 : index
    %c0_60 = arith.constant 0 : index
    %c0_61 = arith.constant 0 : index
    %135 = vector.load %arg16[%c0_59, %c0_60, %c0_61] : memref<1x1x32xf32, #tpu.memory_space<vmem>>, vector<1x1x32xf32>
    %136 = vector.shape_cast %135 : vector<1x1x32xf32> to vector<1x32xf32>
    %c0_62 = arith.constant 0 : index
    %c0_63 = arith.constant 0 : index
    %c0_64 = arith.constant 0 : index
    %137 = vector.load %arg17[%c0_62, %c0_63, %c0_64] : memref<1x1x32xf32, #tpu.memory_space<vmem>>, vector<1x1x32xf32>
    %138 = vector.shape_cast %137 : vector<1x1x32xf32> to vector<1x32xf32>
    %cst_65 = arith.constant dense<0.000000e+00> : vector<16xf32>
    %139 = vector.multi_reduction <add>, %134, %cst_65 [1] : vector<16x32xf32> to vector<16xf32>
    %140 = vector.shape_cast %139 : vector<16xf32> to vector<16x1xf32>
    %cst_66 = arith.constant 3.200000e+01 : f32
    %141 = vector.broadcast %cst_66 : f32 to vector<16x1xf32>
    %142 = arith.divf %140, %141 : vector<16x1xf32>
    %143 = vector.broadcast %142 : vector<16x1xf32> to vector<16x32xf32>
    %144 = arith.subf %134, %143 : vector<16x32xf32>
    %145 = arith.mulf %144, %144 : vector<16x32xf32>
    %cst_67 = arith.constant dense<0.000000e+00> : vector<16xf32>
    %146 = vector.multi_reduction <add>, %145, %cst_67 [1] : vector<16x32xf32> to vector<16xf32>
    %147 = vector.shape_cast %146 : vector<16xf32> to vector<16x1xf32>
    %cst_68 = arith.constant 3.200000e+01 : f32
    %148 = vector.broadcast %cst_68 : f32 to vector<16x1xf32>
    %149 = arith.divf %147, %148 : vector<16x1xf32>
    %150 = vector.broadcast %142 : vector<16x1xf32> to vector<16x32xf32>
    %151 = arith.subf %134, %150 : vector<16x32xf32>
    %cst_69 = arith.constant 9.99999996E-13 : f32
    %152 = vector.broadcast %cst_69 : f32 to vector<16x1xf32>
    %153 = arith.addf %149, %152 : vector<16x1xf32>
    %154 = math.rsqrt %153 : vector<16x1xf32>
    %155 = vector.broadcast %154 : vector<16x1xf32> to vector<16x32xf32>
    %156 = arith.mulf %151, %155 : vector<16x32xf32>
    %157 = vector.broadcast %136 : vector<1x32xf32> to vector<16x32xf32>
    %158 = arith.mulf %156, %157 : vector<16x32xf32>
    %159 = vector.broadcast %138 : vector<1x32xf32> to vector<16x32xf32>
    %160 = arith.addf %158, %159 : vector<16x32xf32>
    %161 = vector.shape_cast %160 : vector<16x32xf32> to vector<2x8x32xf32>
    %c0_70 = arith.constant 0 : index
    %c0_71 = arith.constant 0 : index
    %c0_72 = arith.constant 0 : index
    %162 = vector.load %arg19[%c0_70, %c0_71, %c0_72] : memref<2x8x32xf32, #tpu.memory_space<vmem>>, vector<2x8x32xf32>
    tpu.vector_store %arg19[%c0_70, %c0_71, %c0_72], %161 {strides = array<i32>} : memref<2x8x32xf32, #tpu.memory_space<vmem>>, vector<2x8x32xf32>,
    %c1_i32 = arith.constant 1 : i32
    %163 = arith.cmpi eq, %arg1, %c1_i32 : i32
    %164 = arith.extui %163 : i1 to i32
    %c0_i32_73 = arith.constant 0 : i32
    %165 = arith.cmpi ne, %164, %c0_i32_73 : i32
    scf.if %165 {
      %c0_74 = arith.constant 0 : index
      %c0_75 = arith.constant 0 : index
      %c0_76 = arith.constant 0 : index
      %166 = vector.load %arg18[%c0_74, %c0_75, %c0_76] : memref<2x8x32xf32, #tpu.memory_space<vmem>>, vector<2x8x32xf32>
      tpu.vector_store %arg18[%c0_74, %c0_75, %c0_76], %161 {strides = array<i32>} : memref<2x8x32xf32, #tpu.memory_space<vmem>>, vector<2x8x32xf32>,
    } else {
    }
    return
  }
  func.func @transform_0(%arg0: i32, %arg1: i32) -> (i32, i32, i32) {
    %c0_i32 = arith.constant 0 : i32
    %c0_i32_0 = arith.constant 0 : i32
    %c0_i32_1 = arith.constant 0 : i32
    return %arg0, %c0_i32, %c0_i32_0 : i32, i32, i32
  }
  func.func @transform_1(%arg0: i32, %arg1: i32) -> (i32, i32, i32) {
    %c0_i32 = arith.constant 0 : i32
    %c0_i32_0 = arith.constant 0 : i32
    %c0_i32_1 = arith.constant 0 : i32
    return %arg0, %c0_i32, %c0_i32_0 : i32, i32, i32
  }
  func.func @transform_2(%arg0: i32, %arg1: i32) -> (i32, i32) {
    %c0_i32 = arith.constant 0 : i32
    %c0_i32_0 = arith.constant 0 : i32
    %c0_i32_1 = arith.constant 0 : i32
    return %c0_i32, %c0_i32_0 : i32, i32
  }
  func.func @transform_3(%arg0: i32, %arg1: i32) -> (i32, i32) {
    %c0_i32 = arith.constant 0 : i32
    %c0_i32_0 = arith.constant 0 : i32
    %c0_i32_1 = arith.constant 0 : i32
    return %c0_i32, %c0_i32_0 : i32, i32
  }
  func.func @transform_4(%arg0: i32, %arg1: i32) -> (i32, i32, i32) {
    %c0_i32 = arith.constant 0 : i32
    %c0_i32_0 = arith.constant 0 : i32
    %c0_i32_1 = arith.constant 0 : i32
    return %arg1, %c0_i32, %c0_i32_0 : i32, i32, i32
  }
  func.func @transform_5(%arg0: i32, %arg1: i32) -> (i32, i32, i32) {
    %c0_i32 = arith.constant 0 : i32
    %c0_i32_0 = arith.constant 0 : i32
    %c0_i32_1 = arith.constant 0 : i32
    return %arg1, %c0_i32, %c0_i32_0 : i32, i32, i32
  }
  func.func @transform_6(%arg0: i32, %arg1: i32) -> (i32, i32, i32) {
    %c0_i32 = arith.constant 0 : i32
    %c0_i32_0 = arith.constant 0 : i32
    %c0_i32_1 = arith.constant 0 : i32
    return %arg1, %c0_i32, %c0_i32_0 : i32, i32, i32
  }
  func.func @transform_7(%arg0: i32, %arg1: i32) -> (i32, i32, i32) {
    %c0_i32 = arith.constant 0 : i32
    %c0_i32_0 = arith.constant 0 : i32
    %c0_i32_1 = arith.constant 0 : i32
    return %arg1, %c0_i32, %c0_i32_0 : i32, i32, i32
  }
  func.func @transform_8(%arg0: i32, %arg1: i32) -> (i32, i32, i32) {
    %c0_i32 = arith.constant 0 : i32
    %c0_i32_0 = arith.constant 0 : i32
    %c0_i32_1 = arith.constant 0 : i32
    return %arg1, %c0_i32, %c0_i32_0 : i32, i32, i32
  }
  func.func @transform_9(%arg0: i32, %arg1: i32) -> (i32, i32, i32) {
    %c0_i32 = arith.constant 0 : i32
    %c0_i32_0 = arith.constant 0 : i32
    %c0_i32_1 = arith.constant 0 : i32
    return %arg1, %c0_i32, %c0_i32_0 : i32, i32, i32
  }
  func.func @transform_10(%arg0: i32, %arg1: i32) -> (i32, i32, i32) {
    %c0_i32 = arith.constant 0 : i32
    %c0_i32_0 = arith.constant 0 : i32
    %c0_i32_1 = arith.constant 0 : i32
    return %arg1, %c0_i32, %c0_i32_0 : i32, i32, i32
  }
  func.func @transform_11(%arg0: i32, %arg1: i32) -> (i32, i32, i32) {
    %c0_i32 = arith.constant 0 : i32
    %c0_i32_0 = arith.constant 0 : i32
    %c0_i32_1 = arith.constant 0 : i32
    return %arg1, %c0_i32, %c0_i32_0 : i32, i32, i32
  }
  func.func @transform_12(%arg0: i32, %arg1: i32) -> (i32, i32, i32) {
    %c0_i32 = arith.constant 0 : i32
    %c0_i32_0 = arith.constant 0 : i32
    %c0_i32_1 = arith.constant 0 : i32
    return %arg1, %c0_i32, %c0_i32_0 : i32, i32, i32
  }
  func.func @transform_13(%arg0: i32, %arg1: i32) -> (i32, i32, i32) {
    %c0_i32 = arith.constant 0 : i32
    %c0_i32_0 = arith.constant 0 : i32
    %c0_i32_1 = arith.constant 0 : i32
    return %arg1, %c0_i32, %c0_i32_0 : i32, i32, i32
  }
  func.func @transform_14(%arg0: i32, %arg1: i32) -> (i32, i32, i32) {
    %c0_i32 = arith.constant 0 : i32
    %c0_i32_0 = arith.constant 0 : i32
    %c0_i32_1 = arith.constant 0 : i32
    return %arg1, %c0_i32, %c0_i32_0 : i32, i32, i32
  }
  func.func @transform_15(%arg0: i32, %arg1: i32) -> (i32, i32, i32) {
    %c0_i32 = arith.constant 0 : i32
    %c0_i32_0 = arith.constant 0 : i32
    %c0_i32_1 = arith.constant 0 : i32
    return %arg1, %c0_i32, %c0_i32_0 : i32, i32, i32
  }
  func.func @transform_16(%arg0: i32, %arg1: i32) -> (i32, i32, i32) {
    %c0_i32 = arith.constant 0 : i32
    %c0_i32_0 = arith.constant 0 : i32
    %c0_i32_1 = arith.constant 0 : i32
    return %arg0, %c0_i32, %c0_i32_0 : i32, i32, i32
  }
}

</mosaic_0001>

<llo_original>
// kernel: tpu_custom_call.1
$region0: #{tpu_custom_call.1}
  #allocation0 [shape = 'u32[]', space=smem, size = 0x4, offset = 0x4, fixed_abs, tag = 'smem constant byte address 0x4 - core index']
  #allocation1 [shape = 'u32[72,128]{1,0:T(1,128)}', space=vmem, size = 0x9000, scoped, tag = 'internal scratch']
  #allocation2 [shape = 'f32[2,8,32]{2,1,0:T(8,128)}', space=vmem, size = 0x2000, scoped, tag = 'scratch operand']
  %s0 = inlined_call_operand.vmem [shape: f32[2,8,32], index: 0, kind: input, shape index: {}]
  %s1 = inlined_call_operand.vmem [shape: f32[2,1,8], index: 1, kind: input, shape index: {}]
  %s2 = inlined_call_operand.vmem [shape: f32[1,32], index: 2, kind: input, shape index: {}]
  %s3 = inlined_call_operand.vmem [shape: f32[1,32], index: 3, kind: input, shape index: {}]
  %s4 = inlined_call_operand.vmem [shape: bf16[2,32,96], index: 4, kind: input, shape index: {}]
  %s5 = inlined_call_operand.vmem [shape: f32[2,1,96], index: 5, kind: input, shape index: {}]
  %s6 = inlined_call_operand.vmem [shape: bf16[2,32,32], index: 6, kind: input, shape index: {}]
  %s7 = inlined_call_operand.vmem [shape: f32[2,1,32], index: 7, kind: input, shape index: {}]
  %s8 = inlined_call_operand.vmem [shape: f32[2,1,32], index: 8, kind: input, shape index: {}]
  %s9 = inlined_call_operand.vmem [shape: f32[2,1,32], index: 9, kind: input, shape index: {}]
  %s10 = inlined_call_operand.vmem [shape: bf16[2,32,128], index: 10, kind: input, shape index: {}]
  %s11 = inlined_call_operand.vmem [shape: f32[2,1,128], index: 11, kind: input, shape index: {}]
  %s12 = inlined_call_operand.vmem [shape: bf16[2,128,32], index: 12, kind: input, shape index: {}]
  %s13 = inlined_call_operand.vmem [shape: f32[2,1,32], index: 13, kind: input, shape index: {}]
  %s14 = inlined_call_operand.vmem [shape: f32[2,1,32], index: 14, kind: input, shape index: {}]
  %s15 = inlined_call_operand.vmem [shape: f32[2,1,32], index: 15, kind: input, shape index: {}]
  %s16 = inlined_call_operand.hbm [shape: f32[2,8,32], index: 16, kind: output, shape index: {}]
  %s17 = sld [smem:[#allocation0]]
  $region105: #{tpu_custom_call.1} parent=0
    _
  %s19 = ssub.s32 1, %s17
  %s20 = scalar_select 0, %s19, %s17
  $region1: #{tpu_custom_call.1} parent=0
    #allocation3 [shape = 'u8[8192]{0}', space=vmem, size = 0x2000, scoped, tag = 'output window, operand 0, single buffered']
    #allocation4 [shape = 's32[2]{0}', space=sflag, size = 0x8, scoped, tag = 'scoped memory for tpu_custom_call.1']
    %21 = vsyncpa [#allocation4], 0
    loop: start=0, step=1, limit=4
    $region2: #{tpu_custom_call.1} parent=1 // loop_pre_header
      _
    $region3: #{tpu_custom_call.1} parent=1 // loop_header
      %s23 = sphi 0, %s27
      %p24 = scmp.ge.s32.totalorder %s23, 4
      %s30 = sphi 0, %s42
      %s31 = sphi 0, %s38
      %s32 = sphi 0, %s30
      %s33 = sphi 0, %s31
      %s34 = sphi 0, %s32
      %s35 = sphi 0, %s33
      %s45 = sphi 0, %s47
      %s48 = sphi 0, %s45
      %s49 = sphi 0, %s48
      %s65 = sphi 0, %s49
      %s71 = sphi 0, %s73
      %s74 = sphi 0, %s71
      %s75 = sphi 0, %s74
      %s91 = sphi 0, %s75
      %s95 = sphi 0, %s95
      %s97 = sphi 0, %s95
      %s98 = sphi 0, %s97
      %s112 = sphi 0, %s98
      %s116 = sphi 0, %s116
      %s118 = sphi 0, %s116
      %s119 = sphi 0, %s118
      %s133 = sphi 0, %s119
      %s139 = sphi 0, %s141
      %s142 = sphi 0, %s139
      %s143 = sphi 0, %s142
      %s159 = sphi 0, %s143
      %s165 = sphi 0, %s167
      %s168 = sphi 0, %s165
      %s169 = sphi 0, %s168
      %s185 = sphi 0, %s169
      %s191 = sphi 0, %s193
      %s194 = sphi 0, %s191
      %s195 = sphi 0, %s194
      %s211 = sphi 0, %s195
      %s217 = sphi 0, %s219
      %s220 = sphi 0, %s217
      %s221 = sphi 0, %s220
      %s237 = sphi 0, %s221
      %s243 = sphi 0, %s245
      %s246 = sphi 0, %s243
      %s247 = sphi 0, %s246
      %s263 = sphi 0, %s247
      %s269 = sphi 0, %s271
      %s272 = sphi 0, %s269
      %s273 = sphi 0, %s272
      %s289 = sphi 0, %s273
      %s295 = sphi 0, %s297
      %s298 = sphi 0, %s295
      %s299 = sphi 0, %s298
      %s315 = sphi 0, %s299
      %s321 = sphi 0, %s323
      %s324 = sphi 0, %s321
      %s325 = sphi 0, %s324
      %s341 = sphi 0, %s325
      %s347 = sphi 0, %s349
      %s350 = sphi 0, %s347
      %s351 = sphi 0, %s350
      %s367 = sphi 0, %s351
      %s373 = sphi 0, %s375
      %s376 = sphi 0, %s373
      %s377 = sphi 0, %s376
      %s393 = sphi 0, %s377
      %s399 = sphi 0, %s401
      %s402 = sphi 0, %s399
      %s403 = sphi 0, %s402
      %s419 = sphi 0, %s403
      %s425 = sphi 0, %s427
      %s428 = sphi 0, %s425
      %s429 = sphi 0, %s428
      %s445 = sphi 0, %s429
      %s451 = sphi 0, %s453
      %s454 = sphi 0, %s451
      %s455 = sphi 0, %s454
      %s471 = sphi 0, %s455
    $region4: #{tpu_custom_call.1} parent=1 // loop_header_branch
      %26 = sbr.rel (%p24) target = $region8
    $region5: #{tpu_custom_call.1} parent=1 // loop_body
      %s28 = ssub.s32 %s23, 1
      %s29 = ssub.s32 %s23, 2
      %s36 = sadd.s32 1, %s31
      %p37 = scmp.ge.s32.totalorder %s36, 2
      %s38 = scalar_select %p37, 0, %s36
      %s39 = sadd.s32 1, %s30
      %s40 = scalar_select %p37, %s39, %s30
      %p41 = scmp.ge.s32.totalorder %s40, 1
      %s42 = scalar_select %p41, 0, %s40
      %s43 = ssub.s32 %s30, %s42
      %p44 = scmp.eq.s32.totalorder %s43, 0
      %s46 = sadd.s32 %s45, 1
      %s47 = scalar_select %p44, %s45, %s46
      %p50 = pneg %p44
      %p51 = scmp.eq.s32.totalorder %s23, 1
      %p52 = por %p50, %p51
      %p53 = scmp.ne.s32.totalorder %s45, %s48
      %p54 = scmp.eq.s32.totalorder %s23, 0
      %p55 = por %p53, %p54
      %p56 = scmp.ne.s32.totalorder %s45, %s48
      %p57 = scmp.eq.s32.totalorder %s28, 1
      %p58 = por %p56, %p57
      %p59 = scmp.ne.s32.totalorder %s48, %s49
      %p60 = scmp.eq.s32.totalorder %s28, 0
      %p61 = por %p59, %p60
      %p62 = scmp.ne.s32.totalorder %s48, %s49
      %p63 = scmp.eq.s32.totalorder %s29, 1
      %p64 = por %p62, %p63
      %p66 = scmp.ne.s32.totalorder %s49, %s65
      %p67 = scmp.eq.s32.totalorder %s29, 0
      %p68 = por %p66, %p67
      %s69 = ssub.s32 %s30, %s42
      %p70 = scmp.eq.s32.totalorder %s69, 0
      %s72 = sadd.s32 %s71, 1
      %s73 = scalar_select %p70, %s71, %s72
      %p76 = pneg %p70
      %p77 = scmp.eq.s32.totalorder %s23, 1
      %p78 = por %p76, %p77
      %p79 = scmp.ne.s32.totalorder %s71, %s74
      %p80 = scmp.eq.s32.totalorder %s23, 0
      %p81 = por %p79, %p80
      %p82 = scmp.ne.s32.totalorder %s71, %s74
      %p83 = scmp.eq.s32.totalorder %s28, 1
      %p84 = por %p82, %p83
      %p85 = scmp.ne.s32.totalorder %s74, %s75
      %p86 = scmp.eq.s32.totalorder %s28, 0
      %p87 = por %p85, %p86
      %p88 = scmp.ne.s32.totalorder %s74, %s75
      %p89 = scmp.eq.s32.totalorder %s29, 1
      %p90 = por %p88, %p89
      %p92 = scmp.ne.s32.totalorder %s75, %s91
      %p93 = scmp.eq.s32.totalorder %s29, 0
      %p94 = por %p92, %p93
      %s96 = sadd.s32 %s95, 1
      %p99 = scmp.eq.s32.totalorder %s23, 1
      %p100 = scmp.ne.s32.totalorder %s95, %s97
      %p101 = scmp.eq.s32.totalorder %s23, 0
      %p102 = por %p100, %p101
      %p103 = scmp.ne.s32.totalorder %s95, %s97
      %p104 = scmp.eq.s32.totalorder %s28, 1
      %p105 = por %p103, %p104
      %p106 = scmp.ne.s32.totalorder %s97, %s98
      %p107 = scmp.eq.s32.totalorder %s28, 0
      %p108 = por %p106, %p107
      %p109 = scmp.ne.s32.totalorder %s97, %s98
      %p110 = scmp.eq.s32.totalorder %s29, 1
      %p111 = por %p109, %p110
      %p113 = scmp.ne.s32.totalorder %s98, %s112
      %p114 = scmp.eq.s32.totalorder %s29, 0
      %p115 = por %p113, %p114
      %s117 = sadd.s32 %s116, 1
      %p120 = scmp.eq.s32.totalorder %s23, 1
      %p121 = scmp.ne.s32.totalorder %s116, %s118
      %p122 = scmp.eq.s32.totalorder %s23, 0
      %p123 = por %p121, %p122
      %p124 = scmp.ne.s32.totalorder %s116, %s118
      %p125 = scmp.eq.s32.totalorder %s28, 1
      %p126 = por %p124, %p125
      %p127 = scmp.ne.s32.totalorder %s118, %s119
      %p128 = scmp.eq.s32.totalorder %s28, 0
      %p129 = por %p127, %p128
      %p130 = scmp.ne.s32.totalorder %s118, %s119
      %p131 = scmp.eq.s32.totalorder %s29, 1
      %p132 = por %p130, %p131
      %p134 = scmp.ne.s32.totalorder %s119, %s133
      %p135 = scmp.eq.s32.totalorder %s29, 0
      %p136 = por %p134, %p135
      %s137 = ssub.s32 %s31, %s38
      %p138 = scmp.eq.s32.totalorder %s137, 0
      %s140 = sadd.s32 %s139, 1
      %s141 = scalar_select %p138, %s139, %s140
      %p144 = pneg %p138
      %p145 = scmp.eq.s32.totalorder %s23, 1
      %p146 = por %p144, %p145
      %p147 = scmp.ne.s32.totalorder %s139, %s142
      %p148 = scmp.eq.s32.totalorder %s23, 0
      %p149 = por %p147, %p148
      %p150 = scmp.ne.s32.totalorder %s139, %s142
      %p151 = scmp.eq.s32.totalorder %s28, 1
      %p152 = por %p150, %p151
      %p153 = scmp.ne.s32.totalorder %s142, %s143
      %p154 = scmp.eq.s32.totalorder %s28, 0
      %p155 = por %p153, %p154
      %p156 = scmp.ne.s32.totalorder %s142, %s143
      %p157 = scmp.eq.s32.totalorder %s29, 1
      %p158 = por %p156, %p157
      %p160 = scmp.ne.s32.totalorder %s143, %s159
      %p161 = scmp.eq.s32.totalorder %s29, 0
      %p162 = por %p160, %p161
      %s163 = ssub.s32 %s31, %s38
      %p164 = scmp.eq.s32.totalorder %s163, 0
      %s166 = sadd.s32 %s165, 1
      %s167 = scalar_select %p164, %s165, %s166
      %p170 = pneg %p164
      %p171 = scmp.eq.s32.totalorder %s23, 1
      %p172 = por %p170, %p171
      %p173 = scmp.ne.s32.totalorder %s165, %s168
      %p174 = scmp.eq.s32.totalorder %s23, 0
      %p175 = por %p173, %p174
      %p176 = scmp.ne.s32.totalorder %s165, %s168
      %p177 = scmp.eq.s32.totalorder %s28, 1
      %p178 = por %p176, %p177
      %p179 = scmp.ne.s32.totalorder %s168, %s169
      %p180 = scmp.eq.s32.totalorder %s28, 0
      %p181 = por %p179, %p180
      %p182 = scmp.ne.s32.totalorder %s168, %s169
      %p183 = scmp.eq.s32.totalorder %s29, 1
      %p184 = por %p182, %p183
      %p186 = scmp.ne.s32.totalorder %s169, %s185
      %p187 = scmp.eq.s32.totalorder %s29, 0
      %p188 = por %p186, %p187
      %s189 = ssub.s32 %s31, %s38
      %p190 = scmp.eq.s32.totalorder %s189, 0
      %s192 = sadd.s32 %s191, 1
      %s193 = scalar_select %p190, %s191, %s192
      %p196 = pneg %p190
      %p197 = scmp.eq.s32.totalorder %s23, 1
      %p198 = por %p196, %p197
      %p199 = scmp.ne.s32.totalorder %s191, %s194
      %p200 = scmp.eq.s32.totalorder %s23, 0
      %p201 = por %p199, %p200
      %p202 = scmp.ne.s32.totalorder %s191, %s194
      %p203 = scmp.eq.s32.totalorder %s28, 1
      %p204 = por %p202, %p203
      %p205 = scmp.ne.s32.totalorder %s194, %s195
      %p206 = scmp.eq.s32.totalorder %s28, 0
      %p207 = por %p205, %p206
      %p208 = scmp.ne.s32.totalorder %s194, %s195
      %p209 = scmp.eq.s32.totalorder %s29, 1
      %p210 = por %p208, %p209
      %p212 = scmp.ne.s32.totalorder %s195, %s211
      %p213 = scmp.eq.s32.totalorder %s29, 0
      %p214 = por %p212, %p213
      %s215 = ssub.s32 %s31, %s38
      %p216 = scmp.eq.s32.totalorder %s215, 0
      %s218 = sadd.s32 %s217, 1
      %s219 = scalar_select %p216, %s217, %s218
      %p222 = pneg %p216
      %p223 = scmp.eq.s32.totalorder %s23, 1
      %p224 = por %p222, %p223
      %p225 = scmp.ne.s32.totalorder %s217, %s220
      %p226 = scmp.eq.s32.totalorder %s23, 0
      %p227 = por %p225, %p226
      %p228 = scmp.ne.s32.totalorder %s217, %s220
      %p229 = scmp.eq.s32.totalorder %s28, 1
      %p230 = por %p228, %p229
      %p231 = scmp.ne.s32.totalorder %s220, %s221
      %p232 = scmp.eq.s32.totalorder %s28, 0
      %p233 = por %p231, %p232
      %p234 = scmp.ne.s32.totalorder %s220, %s221
      %p235 = scmp.eq.s32.totalorder %s29, 1
      %p236 = por %p234, %p235
      %p238 = scmp.ne.s32.totalorder %s221, %s237
      %p239 = scmp.eq.s32.totalorder %s29, 0
      %p240 = por %p238, %p239
      %s241 = ssub.s32 %s31, %s38
      %p242 = scmp.eq.s32.totalorder %s241, 0
      %s244 = sadd.s32 %s243, 1
      %s245 = scalar_select %p242, %s243, %s244
      %p248 = pneg %p242
      %p249 = scmp.eq.s32.totalorder %s23, 1
      %p250 = por %p248, %p249
      %p251 = scmp.ne.s32.totalorder %s243, %s246
      %p252 = scmp.eq.s32.totalorder %s23, 0
      %p253 = por %p251, %p252
      %p254 = scmp.ne.s32.totalorder %s243, %s246
      %p255 = scmp.eq.s32.totalorder %s28, 1
      %p256 = por %p254, %p255
      %p257 = scmp.ne.s32.totalorder %s246, %s247
      %p258 = scmp.eq.s32.totalorder %s28, 0
      %p259 = por %p257, %p258
      %p260 = scmp.ne.s32.totalorder %s246, %s247
      %p261 = scmp.eq.s32.totalorder %s29, 1
      %p262 = por %p260, %p261
      %p264 = scmp.ne.s32.totalorder %s247, %s263
      %p265 = scmp.eq.s32.totalorder %s29, 0
      %p266 = por %p264, %p265
      %s267 = ssub.s32 %s31, %s38
      %p268 = scmp.eq.s32.totalorder %s267, 0
      %s270 = sadd.s32 %s269, 1
      %s271 = scalar_select %p268, %s269, %s270
      %p274 = pneg %p268
      %p275 = scmp.eq.s32.totalorder %s23, 1
      %p276 = por %p274, %p275
      %p277 = scmp.ne.s32.totalorder %s269, %s272
      %p278 = scmp.eq.s32.totalorder %s23, 0
      %p279 = por %p277, %p278
      %p280 = scmp.ne.s32.totalorder %s269, %s272
      %p281 = scmp.eq.s32.totalorder %s28, 1
      %p282 = por %p280, %p281
      %p283 = scmp.ne.s32.totalorder %s272, %s273
      %p284 = scmp.eq.s32.totalorder %s28, 0
      %p285 = por %p283, %p284
      %p286 = scmp.ne.s32.totalorder %s272, %s273
      %p287 = scmp.eq.s32.totalorder %s29, 1
      %p288 = por %p286, %p287
      %p290 = scmp.ne.s32.totalorder %s273, %s289
      %p291 = scmp.eq.s32.totalorder %s29, 0
      %p292 = por %p290, %p291
      %s293 = ssub.s32 %s31, %s38
      %p294 = scmp.eq.s32.totalorder %s293, 0
      %s296 = sadd.s32 %s295, 1
      %s297 = scalar_select %p294, %s295, %s296
      %p300 = pneg %p294
      %p301 = scmp.eq.s32.totalorder %s23, 1
      %p302 = por %p300, %p301
      %p303 = scmp.ne.s32.totalorder %s295, %s298
      %p304 = scmp.eq.s32.totalorder %s23, 0
      %p305 = por %p303, %p304
      %p306 = scmp.ne.s32.totalorder %s295, %s298
      %p307 = scmp.eq.s32.totalorder %s28, 1
      %p308 = por %p306, %p307
      %p309 = scmp.ne.s32.totalorder %s298, %s299
      %p310 = scmp.eq.s32.totalorder %s28, 0
      %p311 = por %p309, %p310
      %p312 = scmp.ne.s32.totalorder %s298, %s299
      %p313 = scmp.eq.s32.totalorder %s29, 1
      %p314 = por %p312, %p313
      %p316 = scmp.ne.s32.totalorder %s299, %s315
      %p317 = scmp.eq.s32.totalorder %s29, 0
      %p318 = por %p316, %p317
      %s319 = ssub.s32 %s31, %s38
      %p320 = scmp.eq.s32.totalorder %s319, 0
      %s322 = sadd.s32 %s321, 1
      %s323 = scalar_select %p320, %s321, %s322
      %p326 = pneg %p320
      %p327 = scmp.eq.s32.totalorder %s23, 1
      %p328 = por %p326, %p327
      %p329 = scmp.ne.s32.totalorder %s321, %s324
      %p330 = scmp.eq.s32.totalorder %s23, 0
      %p331 = por %p329, %p330
      %p332 = scmp.ne.s32.totalorder %s321, %s324
      %p333 = scmp.eq.s32.totalorder %s28, 1
      %p334 = por %p332, %p333
      %p335 = scmp.ne.s32.totalorder %s324, %s325
      %p336 = scmp.eq.s32.totalorder %s28, 0
      %p337 = por %p335, %p336
      %p338 = scmp.ne.s32.totalorder %s324, %s325
      %p339 = scmp.eq.s32.totalorder %s29, 1
      %p340 = por %p338, %p339
      %p342 = scmp.ne.s32.totalorder %s325, %s341
      %p343 = scmp.eq.s32.totalorder %s29, 0
      %p344 = por %p342, %p343
      %s345 = ssub.s32 %s31, %s38
      %p346 = scmp.eq.s32.totalorder %s345, 0
      %s348 = sadd.s32 %s347, 1
      %s349 = scalar_select %p346, %s347, %s348
      %p352 = pneg %p346
      %p353 = scmp.eq.s32.totalorder %s23, 1
      %p354 = por %p352, %p353
      %p355 = scmp.ne.s32.totalorder %s347, %s350
      %p356 = scmp.eq.s32.totalorder %s23, 0
      %p357 = por %p355, %p356
      %p358 = scmp.ne.s32.totalorder %s347, %s350
      %p359 = scmp.eq.s32.totalorder %s28, 1
      %p360 = por %p358, %p359
      %p361 = scmp.ne.s32.totalorder %s350, %s351
      %p362 = scmp.eq.s32.totalorder %s28, 0
      %p363 = por %p361, %p362
      %p364 = scmp.ne.s32.totalorder %s350, %s351
      %p365 = scmp.eq.s32.totalorder %s29, 1
      %p366 = por %p364, %p365
      %p368 = scmp.ne.s32.totalorder %s351, %s367
      %p369 = scmp.eq.s32.totalorder %s29, 0
      %p370 = por %p368, %p369
      %s371 = ssub.s32 %s31, %s38
      %p372 = scmp.eq.s32.totalorder %s371, 0
      %s374 = sadd.s32 %s373, 1
      %s375 = scalar_select %p372, %s373, %s374
      %p378 = pneg %p372
      %p379 = scmp.eq.s32.totalorder %s23, 1
      %p380 = por %p378, %p379
      %p381 = scmp.ne.s32.totalorder %s373, %s376
      %p382 = scmp.eq.s32.totalorder %s23, 0
      %p383 = por %p381, %p382
      %p384 = scmp.ne.s32.totalorder %s373, %s376
      %p385 = scmp.eq.s32.totalorder %s28, 1
      %p386 = por %p384, %p385
      %p387 = scmp.ne.s32.totalorder %s376, %s377
      %p388 = scmp.eq.s32.totalorder %s28, 0
      %p389 = por %p387, %p388
      %p390 = scmp.ne.s32.totalorder %s376, %s377
      %p391 = scmp.eq.s32.totalorder %s29, 1
      %p392 = por %p390, %p391
      %p394 = scmp.ne.s32.totalorder %s377, %s393
      %p395 = scmp.eq.s32.totalorder %s29, 0
      %p396 = por %p394, %p395
      %s397 = ssub.s32 %s31, %s38
      %p398 = scmp.eq.s32.totalorder %s397, 0
      %s400 = sadd.s32 %s399, 1
      %s401 = scalar_select %p398, %s399, %s400
      %p404 = pneg %p398
      %p405 = scmp.eq.s32.totalorder %s23, 1
      %p406 = por %p404, %p405
      %p407 = scmp.ne.s32.totalorder %s399, %s402
      %p408 = scmp.eq.s32.totalorder %s23, 0
      %p409 = por %p407, %p408
      %p410 = scmp.ne.s32.totalorder %s399, %s402
      %p411 = scmp.eq.s32.totalorder %s28, 1
      %p412 = por %p410, %p411
      %p413 = scmp.ne.s32.totalorder %s402, %s403
      %p414 = scmp.eq.s32.totalorder %s28, 0
      %p415 = por %p413, %p414
      %p416 = scmp.ne.s32.totalorder %s402, %s403
      %p417 = scmp.eq.s32.totalorder %s29, 1
      %p418 = por %p416, %p417
      %p420 = scmp.ne.s32.totalorder %s403, %s419
      %p421 = scmp.eq.s32.totalorder %s29, 0
      %p422 = por %p420, %p421
      %s423 = ssub.s32 %s31, %s38
      %p424 = scmp.eq.s32.totalorder %s423, 0
      %s426 = sadd.s32 %s425, 1
      %s427 = scalar_select %p424, %s425, %s426
      %p430 = pneg %p424
      %p431 = scmp.eq.s32.totalorder %s23, 1
      %p432 = por %p430, %p431
      %p433 = scmp.ne.s32.totalorder %s425, %s428
      %p434 = scmp.eq.s32.totalorder %s23, 0
      %p435 = por %p433, %p434
      %p436 = scmp.ne.s32.totalorder %s425, %s428
      %p437 = scmp.eq.s32.totalorder %s28, 1
      %p438 = por %p436, %p437
      %p439 = scmp.ne.s32.totalorder %s428, %s429
      %p440 = scmp.eq.s32.totalorder %s28, 0
      %p441 = por %p439, %p440
      %p442 = scmp.ne.s32.totalorder %s428, %s429
      %p443 = scmp.eq.s32.totalorder %s29, 1
      %p444 = por %p442, %p443
      %p446 = scmp.ne.s32.totalorder %s429, %s445
      %p447 = scmp.eq.s32.totalorder %s29, 0
      %p448 = por %p446, %p447
      %s449 = ssub.s32 %s30, %s42
      %p450 = scmp.eq.s32.totalorder %s449, 0
      %s452 = sadd.s32 %s451, 1
      %s453 = scalar_select %p450, %s451, %s452
      %p456 = pneg %p450
      %p457 = scmp.eq.s32.totalorder %s23, 1
      %p458 = por %p456, %p457
      %p459 = scmp.ne.s32.totalorder %s451, %s454
      %p460 = scmp.eq.s32.totalorder %s23, 0
      %p461 = por %p459, %p460
      %p462 = scmp.ne.s32.totalorder %s451, %s454
      %p463 = scmp.eq.s32.totalorder %s28, 1
      %p464 = por %p462, %p463
      %p465 = scmp.ne.s32.totalorder %s454, %s455
      %p466 = scmp.eq.s32.totalorder %s28, 0
      %p467 = por %p465, %p466
      %p468 = scmp.ne.s32.totalorder %s454, %s455
      %p469 = scmp.eq.s32.totalorder %s29, 1
      %p470 = por %p468, %p469
      %p472 = scmp.ne.s32.totalorder %s455, %s471
      %p473 = scmp.eq.s32.totalorder %s29, 0
      %p474 = por %p472, %p473
      %p475 = scmp.le.s32.totalorder 1, %s23
      %p476 = scmp.lt.s32.totalorder %s23, 3
      %p477 = pnand %p475, %p476
      %p478 = pneg %p477
      // Predicated region
      $region9: #{tpu_custom_call.1} parent=5 // pred_check
        _
      $region10: #{tpu_custom_call.1} parent=5 // pred_check_branch
        %480 = sbr.rel (%p477) target = $region12
      $region11: #{tpu_custom_call.1} parent=5 // pred_region
        %s481 = ssub.s32 %s23, 1
        // Predicated region
        $region13: #{tpu_custom_call.1} parent=11 // pred_check
          %p482 = pneg %p61
        $region14: #{tpu_custom_call.1} parent=11 // pred_check_branch
          %484 = sbr.rel (%p482) target = $region16
        $region15: #{tpu_custom_call.1} parent=11 // pred_region
          %s485 = smul.u32 2, %s32
          %p486 = scmp.lt.s32.totalorder %s485, 1
          %s487 = scalar_select %p486, %s485, 1
          %s488 = smul.addr %s487, 8
          %s489 = scalar_lea.vmem %s0, %s488
          %s490 = smul.u32 2, %s32
        $region16: #{tpu_custom_call.1} parent=11 // pred_fallthru
          _
        // Predicated region
        $region17: #{tpu_custom_call.1} parent=11 // pred_check
          %p491 = pneg %p87
        $region18: #{tpu_custom_call.1} parent=11 // pred_check_branch
          %493 = sbr.rel (%p491) target = $region20
        $region19: #{tpu_custom_call.1} parent=11 // pred_region
          %s494 = smul.u32 2, %s32
          %p495 = scmp.lt.s32.totalorder %s494, 1
          %s496 = scalar_select %p495, %s494, 1
          %s497 = scalar_lea.vmem %s1, %s496
          %s498 = smul.u32 2, %s32
        $region20: #{tpu_custom_call.1} parent=11 // pred_fallthru
          _
        // Predicated region
        $region21: #{tpu_custom_call.1} parent=11 // pred_check
          %p499 = pneg %p108
        $region22: #{tpu_custom_call.1} parent=11 // pred_check_branch
          %501 = sbr.rel (%p499) target = $region24
        $region23: #{tpu_custom_call.1} parent=11 // pred_region
          _
        $region24: #{tpu_custom_call.1} parent=11 // pred_fallthru
          _
        // Predicated region
        $region25: #{tpu_custom_call.1} parent=11 // pred_check
          %p502 = pneg %p129
        $region26: #{tpu_custom_call.1} parent=11 // pred_check_branch
          %504 = sbr.rel (%p502) target = $region28
        $region27: #{tpu_custom_call.1} parent=11 // pred_region
          _
        $region28: #{tpu_custom_call.1} parent=11 // pred_fallthru
          _
      $region12: #{tpu_custom_call.1} parent=5 // pred_fallthru
        _
      %p505 = scmp.lt.s32.totalorder %s23, 2
      // Predicated region
      $region29: #{tpu_custom_call.1} parent=5 // pred_check
        %p506 = pneg %p505
      $region30: #{tpu_custom_call.1} parent=5 // pred_check_branch
        %508 = sbr.rel (%p506) target = $region32
      $region31: #{tpu_custom_call.1} parent=5 // pred_region
        // Predicated region
        $region33: #{tpu_custom_call.1} parent=31 // pred_check
          %p509 = pneg %p149
        $region34: #{tpu_custom_call.1} parent=31 // pred_check_branch
          %511 = sbr.rel (%p509) target = $region36
        $region35: #{tpu_custom_call.1} parent=31 // pred_region
          %p512 = scmp.lt.s32.totalorder %s31, 1
          %s513 = scalar_select %p512, %s31, 1
          %s514 = smul.addr %s513, 4
          %s515 = smul.addr %s514, 4
          %s516 = scalar_lea.vmem %s4, %s515
        $region36: #{tpu_custom_call.1} parent=31 // pred_fallthru
          _
        // Predicated region
        $region37: #{tpu_custom_call.1} parent=31 // pred_check
          %p517 = pneg %p175
        $region38: #{tpu_custom_call.1} parent=31 // pred_check_branch
          %519 = sbr.rel (%p517) target = $region40
        $region39: #{tpu_custom_call.1} parent=31 // pred_region
          %p520 = scmp.lt.s32.totalorder %s31, 1
          %s521 = scalar_select %p520, %s31, 1
          %s522 = scalar_lea.vmem %s5, %s521
        $region40: #{tpu_custom_call.1} parent=31 // pred_fallthru
          _
        // Predicated region
        $region41: #{tpu_custom_call.1} parent=31 // pred_check
          %p523 = pneg %p201
        $region42: #{tpu_custom_call.1} parent=31 // pred_check_branch
          %525 = sbr.rel (%p523) target = $region44
        $region43: #{tpu_custom_call.1} parent=31 // pred_region
          %p526 = scmp.lt.s32.totalorder %s31, 1
          %s527 = scalar_select %p526, %s31, 1
          %s528 = smul.addr %s527, 4
          %s529 = smul.addr %s528, 4
          %s530 = scalar_lea.vmem %s6, %s529
        $region44: #{tpu_custom_call.1} parent=31 // pred_fallthru
          _
        // Predicated region
        $region45: #{tpu_custom_call.1} parent=31 // pred_check
          %p531 = pneg %p227
        $region46: #{tpu_custom_call.1} parent=31 // pred_check_branch
          %533 = sbr.rel (%p531) target = $region48
        $region47: #{tpu_custom_call.1} parent=31 // pred_region
          %p534 = scmp.lt.s32.totalorder %s31, 1
          %s535 = scalar_select %p534, %s31, 1
          %s536 = scalar_lea.vmem %s7, %s535
        $region48: #{tpu_custom_call.1} parent=31 // pred_fallthru
          _
        // Predicated region
        $region49: #{tpu_custom_call.1} parent=31 // pred_check
          %p537 = pneg %p253
        $region50: #{tpu_custom_call.1} parent=31 // pred_check_branch
          %539 = sbr.rel (%p537) target = $region52
        $region51: #{tpu_custom_call.1} parent=31 // pred_region
          %p540 = scmp.lt.s32.totalorder %s31, 1
          %s541 = scalar_select %p540, %s31, 1
          %s542 = scalar_lea.vmem %s8, %s541
        $region52: #{tpu_custom_call.1} parent=31 // pred_fallthru
          _
        // Predicated region
        $region53: #{tpu_custom_call.1} parent=31 // pred_check
          %p543 = pneg %p279
        $region54: #{tpu_custom_call.1} parent=31 // pred_check_branch
          %545 = sbr.rel (%p543) target = $region56
        $region55: #{tpu_custom_call.1} parent=31 // pred_region
          %p546 = scmp.lt.s32.totalorder %s31, 1
          %s547 = scalar_select %p546, %s31, 1
          %s548 = scalar_lea.vmem %s9, %s547
        $region56: #{tpu_custom_call.1} parent=31 // pred_fallthru
          _
        // Predicated region
        $region57: #{tpu_custom_call.1} parent=31 // pred_check
          %p549 = pneg %p305
        $region58: #{tpu_custom_call.1} parent=31 // pred_check_branch
          %551 = sbr.rel (%p549) target = $region60
        $region59: #{tpu_custom_call.1} parent=31 // pred_region
          %p552 = scmp.lt.s32.totalorder %s31, 1
          %s553 = scalar_select %p552, %s31, 1
          %s554 = smul.addr %s553, 4
          %s555 = smul.addr %s554, 4
          %s556 = scalar_lea.vmem %s10, %s555
        $region60: #{tpu_custom_call.1} parent=31 // pred_fallthru
          _
        // Predicated region
        $region61: #{tpu_custom_call.1} parent=31 // pred_check
          %p557 = pneg %p331
        $region62: #{tpu_custom_call.1} parent=31 // pred_check_branch
          %559 = sbr.rel (%p557) target = $region64
        $region63: #{tpu_custom_call.1} parent=31 // pred_region
          %p560 = scmp.lt.s32.totalorder %s31, 1
          %s561 = scalar_select %p560, %s31, 1
          %s562 = scalar_lea.vmem %s11, %s561
        $region64: #{tpu_custom_call.1} parent=31 // pred_fallthru
          _
        // Predicated region
        $region65: #{tpu_custom_call.1} parent=31 // pred_check
          %p563 = pneg %p357
        $region66: #{tpu_custom_call.1} parent=31 // pred_check_branch
          %565 = sbr.rel (%p563) target = $region68
        $region67: #{tpu_custom_call.1} parent=31 // pred_region
          %p566 = scmp.lt.s32.totalorder %s31, 1
          %s567 = scalar_select %p566, %s31, 1
          %s568 = smul.addr %s567, 16
          %s569 = smul.addr %s568, 4
          %s570 = scalar_lea.vmem %s12, %s569
        $region68: #{tpu_custom_call.1} parent=31 // pred_fallthru
          _
        // Predicated region
        $region69: #{tpu_custom_call.1} parent=31 // pred_check
          %p571 = pneg %p383
        $region70: #{tpu_custom_call.1} parent=31 // pred_check_branch
          %573 = sbr.rel (%p571) target = $region72
        $region71: #{tpu_custom_call.1} parent=31 // pred_region
          %p574 = scmp.lt.s32.totalorder %s31, 1
          %s575 = scalar_select %p574, %s31, 1
          %s576 = scalar_lea.vmem %s13, %s575
        $region72: #{tpu_custom_call.1} parent=31 // pred_fallthru
          _
        // Predicated region
        $region73: #{tpu_custom_call.1} parent=31 // pred_check
          %p577 = pneg %p409
        $region74: #{tpu_custom_call.1} parent=31 // pred_check_branch
          %579 = sbr.rel (%p577) target = $region76
        $region75: #{tpu_custom_call.1} parent=31 // pred_region
          %p580 = scmp.lt.s32.totalorder %s31, 1
          %s581 = scalar_select %p580, %s31, 1
          %s582 = scalar_lea.vmem %s14, %s581
        $region76: #{tpu_custom_call.1} parent=31 // pred_fallthru
          _
        // Predicated region
        $region77: #{tpu_custom_call.1} parent=31 // pred_check
          %p583 = pneg %p435
        $region78: #{tpu_custom_call.1} parent=31 // pred_check_branch
          %585 = sbr.rel (%p583) target = $region80
        $region79: #{tpu_custom_call.1} parent=31 // pred_region
          %p586 = scmp.lt.s32.totalorder %s31, 1
          %s587 = scalar_select %p586, %s31, 1
          %s588 = scalar_lea.vmem %s15, %s587
        $region80: #{tpu_custom_call.1} parent=31 // pred_fallthru
          _
      $region32: #{tpu_custom_call.1} parent=5 // pred_fallthru
        _
      %p589 = scmp.le.s32.totalorder 1, %s23
      %p590 = scmp.lt.s32.totalorder %s23, 3
      %p591 = pnand %p589, %p590
      %p592 = pneg %p591
      // Predicated region
      $region81: #{tpu_custom_call.1} parent=5 // pred_check
        _
      $region82: #{tpu_custom_call.1} parent=5 // pred_check_branch
        %594 = sbr.rel (%p591) target = $region84
      $region83: #{tpu_custom_call.1} parent=5 // pred_region
        %s595 = ssub.s32 %s23, 1
        %s596 = smul.u32 2, %s32
        %p597 = scmp.lt.s32.totalorder %s596, 1
        %s598 = scalar_select %p597, %s596, 1
        %s599 = smul.addr %s598, 8
        %s600 = scalar_lea.vmem %s0, %s599
        %p601 = pneg %p61
        %p602 = pneg %p58
        %s603 = smul.u32 2, %s32
        %p604 = scmp.lt.s32.totalorder %s603, 1
        %s605 = scalar_select %p604, %s603, 1
        %s606 = scalar_lea.vmem %s1, %s605
        %p607 = pneg %p87
        %p608 = pneg %p84
        %p609 = pneg %p108
        %p610 = pneg %p105
        %p611 = pneg %p129
        %p612 = pneg %p126
        %p613 = scmp.lt.s32.totalorder %s33, 1
        %s614 = scalar_select %p613, %s33, 1
        %s615 = smul.addr %s614, 4
        %s616 = smul.addr %s615, 4
        %s617 = scalar_lea.vmem %s4, %s616
        %p618 = pneg %p155
        %p619 = pneg %p152
        %p620 = scmp.lt.s32.totalorder %s33, 1
        %s621 = scalar_select %p620, %s33, 1
        %s622 = scalar_lea.vmem %s5, %s621
        %p623 = pneg %p181
        %p624 = pneg %p178
        %p625 = scmp.lt.s32.totalorder %s33, 1
        %s626 = scalar_select %p625, %s33, 1
        %s627 = smul.addr %s626, 4
        %s628 = smul.addr %s627, 4
        %s629 = scalar_lea.vmem %s6, %s628
        %p630 = pneg %p207
        %p631 = pneg %p204
        %p632 = scmp.lt.s32.totalorder %s33, 1
        %s633 = scalar_select %p632, %s33, 1
        %s634 = scalar_lea.vmem %s7, %s633
        %p635 = pneg %p233
        %p636 = pneg %p230
        %p637 = scmp.lt.s32.totalorder %s33, 1
        %s638 = scalar_select %p637, %s33, 1
        %s639 = scalar_lea.vmem %s8, %s638
        %p640 = pneg %p259
        %p641 = pneg %p256
        %p642 = scmp.lt.s32.totalorder %s33, 1
        %s643 = scalar_select %p642, %s33, 1
        %s644 = scalar_lea.vmem %s9, %s643
        %p645 = pneg %p285
        %p646 = pneg %p282
        %p647 = scmp.lt.s32.totalorder %s33, 1
        %s648 = scalar_select %p647, %s33, 1
        %s649 = smul.addr %s648, 4
        %s650 = smul.addr %s649, 4
        %s651 = scalar_lea.vmem %s10, %s650
        %p652 = pneg %p311
        %p653 = pneg %p308
        %p654 = scmp.lt.s32.totalorder %s33, 1
        %s655 = scalar_select %p654, %s33, 1
        %s656 = scalar_lea.vmem %s11, %s655
        %p657 = pneg %p337
        %p658 = pneg %p334
        %p659 = scmp.lt.s32.totalorder %s33, 1
        %s660 = scalar_select %p659, %s33, 1
        %s661 = smul.addr %s660, 16
        %s662 = smul.addr %s661, 4
        %s663 = scalar_lea.vmem %s12, %s662
        %p664 = pneg %p363
        %p665 = pneg %p360
        %p666 = scmp.lt.s32.totalorder %s33, 1
        %s667 = scalar_select %p666, %s33, 1
        %s668 = scalar_lea.vmem %s13, %s667
        %p669 = pneg %p389
        %p670 = pneg %p386
        %p671 = scmp.lt.s32.totalorder %s33, 1
        %s672 = scalar_select %p671, %s33, 1
        %s673 = scalar_lea.vmem %s14, %s672
        %p674 = pneg %p415
        %p675 = pneg %p412
        %p676 = scmp.lt.s32.totalorder %s33, 1
        %s677 = scalar_select %p676, %s33, 1
        %s678 = scalar_lea.vmem %s15, %s677
        %p679 = pneg %p441
        %p680 = pneg %p438
        %p681 = pneg %p467
        %p682 = pneg %p464
        %s683 = smul.u32 2, %s32
        %p684 = scmp.lt.s32.totalorder %s683, 1
        %s685 = scalar_select %p684, %s683, 1
        %s686 = smul.addr %s685, 8
        %s687 = scalar_lea.vmem %s0, %s686
        %s688 = smul.u32 2, %s32
        %s689 = smul.u32 2, %s32
        %p690 = scmp.lt.s32.totalorder %s689, 1
        %s691 = scalar_select %p690, %s689, 1
        %s692 = scalar_lea.vmem %s1, %s691
        %s693 = smul.u32 2, %s32
        %p694 = scmp.lt.s32.totalorder %s33, 1
        %s695 = scalar_select %p694, %s33, 1
        %s696 = smul.addr %s695, 4
        %s697 = smul.addr %s696, 4
        %s698 = scalar_lea.vmem %s4, %s697
        %p699 = scmp.lt.s32.totalorder %s33, 1
        %s700 = scalar_select %p699, %s33, 1
        %s701 = scalar_lea.vmem %s5, %s700
        %p702 = scmp.lt.s32.totalorder %s33, 1
        %s703 = scalar_select %p702, %s33, 1
        %s704 = smul.addr %s703, 4
        %s705 = smul.addr %s704, 4
        %s706 = scalar_lea.vmem %s6, %s705
        %p707 = scmp.lt.s32.totalorder %s33, 1
        %s708 = scalar_select %p707, %s33, 1
        %s709 = scalar_lea.vmem %s7, %s708
        %p710 = scmp.lt.s32.totalorder %s33, 1
        %s711 = scalar_select %p710, %s33, 1
        %s712 = scalar_lea.vmem %s8, %s711
        %p713 = scmp.lt.s32.totalorder %s33, 1
        %s714 = scalar_select %p713, %s33, 1
        %s715 = scalar_lea.vmem %s9, %s714
        %p716 = scmp.lt.s32.totalorder %s33, 1
        %s717 = scalar_select %p716, %s33, 1
        %s718 = smul.addr %s717, 4
        %s719 = smul.addr %s718, 4
        %s720 = scalar_lea.vmem %s10, %s719
        %p721 = scmp.lt.s32.totalorder %s33, 1
        %s722 = scalar_select %p721, %s33, 1
        %s723 = scalar_lea.vmem %s11, %s722
        %p724 = scmp.lt.s32.totalorder %s33, 1
        %s725 = scalar_select %p724, %s33, 1
        %s726 = smul.addr %s725, 16
        %s727 = smul.addr %s726, 4
        %s728 = scalar_lea.vmem %s12, %s727
        %p729 = scmp.lt.s32.totalorder %s33, 1
        %s730 = scalar_select %p729, %s33, 1
        %s731 = scalar_lea.vmem %s13, %s730
        %p732 = scmp.lt.s32.totalorder %s33, 1
        %s733 = scalar_select %p732, %s33, 1
        %s734 = scalar_lea.vmem %s14, %s733
        %p735 = scmp.lt.s32.totalorder %s33, 1
        %s736 = scalar_select %p735, %s33, 1
        %s737 = scalar_lea.vmem %s15, %s736
        %s738 = smul.u32 2, %s32
        %p740 = scmp.eq.s32.totalorder %s33, 0
        // Predicated region
        $region85: #{tpu_custom_call.1} parent=83 // pred_check
          %p741 = pneg %p740
        $region86: #{tpu_custom_call.1} parent=83 // pred_check_branch
          %743 = sbr.rel (%p741) target = $region88
        $region87: #{tpu_custom_call.1} parent=83 // pred_region
          %v744 = vld [vmem:[%s687] sm:$0xff]
          %v745 = vld [vmem:[%s687 + $0x8] sm:$0xff]
          %v746 = vld [vmem:[%s2] sm:$0x1]
          %v747 = vld [vmem:[%s3] sm:$0x1]
          %vm748 = vcmask 261120
          %v749 = vsel %vm748, %v744, 0.0
          %750 = vadd.xlane.f32.xlu0 %v749
          %v751 = vpop.xlane.xlu0 %750
          %v752 = vsel %vm748, %v745, 0.0
          %753 = vadd.xlane.f32.xlu0 %v752
          %v754 = vpop.xlane.xlu0 %753
          %v755 = vrcp.pop 32.0
          %v756 = vmul.f32 32.0, %v755
          %v757 = vsub.f32 1.0, %v756
          %v758 = vmul.f32 %v755, %v757
          %v759 = vadd.f32 %v755, %v758
          %vm760 = vweird.f32 %v755
          %v761 = vsel %vm760, %v755, %v759
          %v762 = vmul.f32 %v751, %v761
          %v763 = vmul.f32 %v754, %v761
          %v764 = vsub.f32 %v744, %v762
          %v765 = vsub.f32 %v745, %v763
          %v766 = vmul.f32 %v764, %v764
          %v767 = vmul.f32 %v765, %v765
          %v768 = vsel %vm748, %v766, 0.0
          %769 = vadd.xlane.f32.xlu0 %v768
          %v770 = vpop.xlane.xlu0 %769
          %v771 = vsel %vm748, %v767, 0.0
          %772 = vadd.xlane.f32.xlu0 %v771
          %v773 = vpop.xlane.xlu0 %772
          %v774 = vmul.f32 %v770, %v761
          %v775 = vmul.f32 %v773, %v761
          %v776 = vadd.f32 %v774, 1e-12
          %v777 = vadd.f32 %v775, 1e-12
          %v778 = vrsqrt.pop %v776
          %v779 = vmul.f32 %v778, %v776
          %v780 = vmul.f32 %v779, %v778
          %v781 = vmul.f32 0.5, %v780
          %v782 = vsub.f32 1.5, %v781
          %v783 = vmul.f32 %v778, %v782
          %vm784 = vweird.f32 %v776
          %vm785 = vweird.f32 %v778
          %vm786 = vmor %vm784, %vm785
          %v787 = vsel %vm786, %v778, %v783
          %v788 = vrsqrt.pop %v777
          %v789 = vmul.f32 %v788, %v777
          %v790 = vmul.f32 %v789, %v788
          %v791 = vmul.f32 0.5, %v790
          %v792 = vsub.f32 1.5, %v791
          %v793 = vmul.f32 %v788, %v792
          %vm794 = vweird.f32 %v777
          %vm795 = vweird.f32 %v788
          %vm796 = vmor %vm794, %vm795
          %v797 = vsel %vm796, %v788, %v793
          %v798 = vmul.f32 %v764, %v787
          %v799 = vmul.f32 %v765, %v797
          %v801 = vperm.slane %v746, 0
          %v803 = vmul.f32 %v798, %v801
          %v804 = vmul.f32 %v799, %v801
          %v806 = vperm.slane %v747, 0
          %v808 = vadd.f32 %v803, %v806
          %v809 = vadd.f32 %v804, %v806
          %810 = vst.msk [vmem:[#allocation2] sm:$0xff] %vm748, %v808
          %811 = vst.msk [vmem:[#allocation2 + $0x8] sm:$0xff] %vm748, %v809
        $region88: #{tpu_custom_call.1} parent=83 // pred_fallthru
          _
        %v812 = vlaneseq
        %v813 = vshrl.u32 %v812, 7
        %v814 = vlaneseq
        %v815 = vand.u32 %v814, 127
        %vm816 = vcmp.ge.s32.totalorder %v813, %v815
        %v817 = vsel %vm816, 1, 0
        %v818 = vcvt.s32.f32 %v817
        %v819 = vld [vmem:[%s692] sm:$0x1]
        %v820 = vld [vmem:[%s692 + $0x1] sm:$0x1]
        %v823 = vperm.slane %v819, 0
        %v824 = vperm.slane %v820, 0
        %v827 = vmul.f32 %v823, %v818
        %v828 = vmul.f32 %v824, %v818
        %v829 = vsub.f32 1.0, %v827
        %v830 = vsub.f32 1.0, %v828
        %v831 = vmul.f32 %v829, -10000.0
        %v832 = vmul.f32 %v830, -10000.0
        %v833 = vld [vmem:[#allocation2] sm:$0xff]
        %v834 = vld [vmem:[#allocation2 + $0x8] sm:$0xff]
        %v835 = vpack.c.bf16 %v834, %v833
        %v836 = vld [vmem:[%s698] sm:$0xf]
        %v837 = vld [vmem:[%s698 + $0x4] sm:$0xf]
        %v838 = vld [vmem:[%s698 + $0x8] sm:$0xf]
        %v839 = vld [vmem:[%s698 + $0xc] sm:$0xf]
        %v840 = vld [vmem:[%s701] sm:$0x1]
        %v842 = vperm.slane %v840, 0
        %v848 = vunpack.c.l.b16 %v836
        %v849 = vunpack.c.l.b16 %v837
        %v850 = vunpack.c.l.b16 %v838
        %v851 = vunpack.c.l.b16 %v839
        %v852 = vpack.c.b16 %v849, %v848
        %v853 = vpack.c.b16 %v851, %v850
        %vm856 = vcmask 261120
        %v858 = vsel %vm856, %v835, 0
        %860 = vmatpush.bf16.msra.mxu0 0
        %861 = vmatpush.bf16.msra.mxu0 0
        %862 = vmatpush.bf16.msra.mxu0 0
        %863 = vmatpush.bf16.msra.mxu0 0
        %864 = vmatpush.bf16.msra.mxu0 0
        %865 = vmatpush.bf16.msra.mxu0 0
        %866 = vmatpush.bf16.msra.mxu0 %v853
        %867 = vmatpush.bf16.msra.mxu0 %v852
        %868 = vmatmul.bf16.gmra.mxu0 %v858
        %v869 = vpop.f32.mrf.mxu0
        %v870 = vadd.f32 %v842, %v869
        %v871 = vpop.f32.mrf.mxu0
        %v872 = vadd.f32 %v842, %v871
        %873 = vdwg.mxu0
        %v874 = vpack.c.bf16 %v870, %v870
        %v875 = vpack.c.bf16 %v872, %v872
        %v877 = vunpack.c.l.b16 %v874
        %v878 = vpack.c.b16 %v877, %v877
        %879 = vrot.lane.b32.xlu0 %v878, 96
        %v880 = vpop.permute.xlu0 %879
        %vm881 = vcmask 130048
        %v883 = vsel %vm881, %v874, 0
        %v886 = vsel %vm881, %v880, 0
        %888 = vmatpush.bf16.xpose.msra.mxu0 0
        %889 = vmatpush.bf16.xpose.msra.mxu0 0
        %890 = vmatpush.bf16.xpose.msra.mxu0 0
        %891 = vmatpush.bf16.xpose.msra.mxu0 0
        %892 = vmatpush.bf16.xpose.msra.mxu0 0
        %893 = vmatpush.bf16.xpose.msra.mxu0 0
        %894 = vmatpush.bf16.xpose.msra.mxu0 0
        %895 = vmatpush.bf16.xpose.msra.mxu0 %v886
        %896 = vmatmul.bf16.gmra.mxu0 %v883
        %v897 = vpop.f32.mrf.mxu0
        %v898 = vadd.f32 0.0, %v897
        %v899 = vpop.f32.mrf.mxu0
        %900 = vdwg.mxu0
        %v902 = vunpack.c.l.b16 %v875
        %v903 = vpack.c.b16 %v902, %v902
        %904 = vrot.lane.b32.xlu0 %v903, 96
        %v905 = vpop.permute.xlu0 %904
        %v907 = vsel %vm881, %v875, 0
        %v910 = vsel %vm881, %v905, 0
        %912 = vmatpush.bf16.xpose.msra.mxu0 0
        %913 = vmatpush.bf16.xpose.msra.mxu0 0
        %914 = vmatpush.bf16.xpose.msra.mxu0 0
        %915 = vmatpush.bf16.xpose.msra.mxu0 0
        %916 = vmatpush.bf16.xpose.msra.mxu0 0
        %917 = vmatpush.bf16.xpose.msra.mxu0 0
        %918 = vmatpush.bf16.xpose.msra.mxu0 0
        %919 = vmatpush.bf16.xpose.msra.mxu0 %v910
        %920 = vmatmul.bf16.gmra.mxu0 %v907
        %v921 = vpop.f32.mrf.mxu0
        %v922 = vadd.f32 0.0, %v921
        %v923 = vpop.f32.mrf.mxu0
        %924 = vdwg.mxu0
        %v925 = vmul.f32 %v898, 0.25
        %v926 = vmul.f32 %v922, 0.25
        %v927 = vadd.f32 %v925, %v831
        %v928 = vadd.f32 %v926, %v832
        %vm929 = vcmask 64512
        %v930 = vsel %vm929, %v927, -inf
        %931 = vmax.xlane.f32.xlu0 %v930
        %v932 = vpop.xlane.xlu0 %931
        %v933 = vsel %vm929, %v928, -inf
        %934 = vmax.xlane.f32.xlu0 %v933
        %v935 = vpop.xlane.xlu0 %934
        %v936 = vsub.f32 %v927, %v932
        %v937 = vsub.f32 %v928, %v935
        %v938 = vmul.f32 %v936, 1.442695
        %v939 = vpow.pop %v938
        %v940 = vmul.f32 %v937, 1.442695
        %v941 = vpow.pop %v940
        %v942 = vsel %vm929, %v939, 0.0
        %943 = vadd.xlane.f32.xlu0 %v942
        %v944 = vpop.xlane.xlu0 %943
        %v945 = vsel %vm929, %v941, 0.0
        %946 = vadd.xlane.f32.xlu0 %v945
        %v947 = vpop.xlane.xlu0 %946
        %v948 = vrcp.pop %v944
        %v949 = vrcp.pop %v947
        %v950 = vmul.f32 %v939, %v948
        %v951 = vmul.f32 %v941, %v949
        %v952 = vpack.c.bf16 %v950, %v950
        %v953 = vpack.c.bf16 %v951, %v951
        %954 = vrot.lane.b32.xlu0 %v878, 64
        %v955 = vpop.permute.xlu0 %954
        %v957 = vsel %vm929, %v952, 0
        %vm959 = vcmask 1043456
        %v961 = vsel %vm959, %v955, 0
        %963 = vmatpush.bf16.msra.mxu0 0
        %964 = vmatpush.bf16.msra.mxu0 0
        %965 = vmatpush.bf16.msra.mxu0 0
        %966 = vmatpush.bf16.msra.mxu0 0
        %967 = vmatpush.bf16.msra.mxu0 0
        %968 = vmatpush.bf16.msra.mxu0 0
        %969 = vmatpush.bf16.msra.mxu0 0
        %970 = vmatpush.bf16.msra.mxu0 %v961
        %971 = vmatmul.bf16.gmra.mxu0 %v957
        %v972 = vpop.f32.mrf.mxu0
        %v973 = vadd.f32 0.0, %v972
        %v974 = vpop.f32.mrf.mxu0
        %975 = vdwg.mxu0
        %976 = vrot.lane.b32.xlu0 %v903, 64
        %v977 = vpop.permute.xlu0 %976
        %v979 = vsel %vm929, %v953, 0
        %v982 = vsel %vm959, %v977, 0
        %984 = vmatpush.bf16.msra.mxu0 0
        %985 = vmatpush.bf16.msra.mxu0 0
        %986 = vmatpush.bf16.msra.mxu0 0
        %987 = vmatpush.bf16.msra.mxu0 0
        %988 = vmatpush.bf16.msra.mxu0 0
        %989 = vmatpush.bf16.msra.mxu0 0
        %990 = vmatpush.bf16.msra.mxu0 0
        %991 = vmatpush.bf16.msra.mxu0 %v982
        %992 = vmatmul.bf16.gmra.mxu0 %v979
        %v993 = vpop.f32.mrf.mxu0
        %v994 = vadd.f32 0.0, %v993
        %v995 = vpop.f32.mrf.mxu0
        %996 = vdwg.mxu0
        %997 = vrot.lane.b32.xlu0 %v878, 112
        %v998 = vpop.permute.xlu0 %997
        %999 = vrot.lane.b32.xlu0 %v878, 80
        %v1000 = vpop.permute.xlu0 %999
        %v1002 = vsel %vm881, %v998, 0
        %v1005 = vsel %vm881, %v1000, 0
        %1007 = vmatpush.bf16.xpose.msra.mxu0 0
        %1008 = vmatpush.bf16.xpose.msra.mxu0 0
        %1009 = vmatpush.bf16.xpose.msra.mxu0 0
        %1010 = vmatpush.bf16.xpose.msra.mxu0 0
        %1011 = vmatpush.bf16.xpose.msra.mxu0 0
        %1012 = vmatpush.bf16.xpose.msra.mxu0 0
        %1013 = vmatpush.bf16.xpose.msra.mxu0 0
        %1014 = vmatpush.bf16.xpose.msra.mxu0 %v1005
        %1015 = vmatmul.bf16.gmra.mxu0 %v1002
        %v1016 = vpop.f32.mrf.mxu0
        %v1017 = vadd.f32 0.0, %v1016
        %v1018 = vpop.f32.mrf.mxu0
        %1019 = vdwg.mxu0
        %1020 = vrot.lane.b32.xlu0 %v903, 112
        %v1021 = vpop.permute.xlu0 %1020
        %1022 = vrot.lane.b32.xlu0 %v903, 80
        %v1023 = vpop.permute.xlu0 %1022
        %v1025 = vsel %vm881, %v1021, 0
        %v1028 = vsel %vm881, %v1023, 0
        %1030 = vmatpush.bf16.xpose.msra.mxu0 0
        %1031 = vmatpush.bf16.xpose.msra.mxu0 0
        %1032 = vmatpush.bf16.xpose.msra.mxu0 0
        %1033 = vmatpush.bf16.xpose.msra.mxu0 0
        %1034 = vmatpush.bf16.xpose.msra.mxu0 0
        %1035 = vmatpush.bf16.xpose.msra.mxu0 0
        %1036 = vmatpush.bf16.xpose.msra.mxu0 0
        %1037 = vmatpush.bf16.xpose.msra.mxu0 %v1028
        %1038 = vmatmul.bf16.gmra.mxu0 %v1025
        %v1039 = vpop.f32.mrf.mxu0
        %v1040 = vadd.f32 0.0, %v1039
        %v1041 = vpop.f32.mrf.mxu0
        %1042 = vdwg.mxu0
        %v1043 = vmul.f32 %v1017, 0.25
        %v1044 = vmul.f32 %v1040, 0.25
        %v1045 = vadd.f32 %v1043, %v831
        %v1046 = vadd.f32 %v1044, %v832
        %v1047 = vsel %vm929, %v1045, -inf
        %1048 = vmax.xlane.f32.xlu0 %v1047
        %v1049 = vpop.xlane.xlu0 %1048
        %v1050 = vsel %vm929, %v1046, -inf
        %1051 = vmax.xlane.f32.xlu0 %v1050
        %v1052 = vpop.xlane.xlu0 %1051
        %v1053 = vsub.f32 %v1045, %v1049
        %v1054 = vsub.f32 %v1046, %v1052
        %v1055 = vmul.f32 %v1053, 1.442695
        %v1056 = vpow.pop %v1055
        %v1057 = vmul.f32 %v1054, 1.442695
        %v1058 = vpow.pop %v1057
        %v1059 = vsel %vm929, %v1056, 0.0
        %1060 = vadd.xlane.f32.xlu0 %v1059
        %v1061 = vpop.xlane.xlu0 %1060
        %v1062 = vsel %vm929, %v1058, 0.0
        %1063 = vadd.xlane.f32.xlu0 %v1062
        %v1064 = vpop.xlane.xlu0 %1063
        %v1065 = vrcp.pop %v1061
        %v1066 = vrcp.pop %v1064
        %v1067 = vmul.f32 %v1056, %v1065
        %v1068 = vmul.f32 %v1058, %v1066
        %v1069 = vpack.c.bf16 %v1067, %v1067
        %v1070 = vpack.c.bf16 %v1068, %v1068
        %1071 = vrot.lane.b32.xlu0 %v878, 48
        %v1072 = vpop.permute.xlu0 %1071
        %v1074 = vsel %vm929, %v1069, 0
        %v1077 = vsel %vm959, %v1072, 0
        %1079 = vmatpush.bf16.msra.mxu0 0
        %1080 = vmatpush.bf16.msra.mxu0 0
        %1081 = vmatpush.bf16.msra.mxu0 0
        %1082 = vmatpush.bf16.msra.mxu0 0
        %1083 = vmatpush.bf16.msra.mxu0 0
        %1084 = vmatpush.bf16.msra.mxu0 0
        %1085 = vmatpush.bf16.msra.mxu0 0
        %1086 = vmatpush.bf16.msra.mxu0 %v1077
        %1087 = vmatmul.bf16.gmra.mxu0 %v1074
        %v1088 = vpop.f32.mrf.mxu0
        %v1089 = vadd.f32 0.0, %v1088
        %v1090 = vpop.f32.mrf.mxu0
        %1091 = vdwg.mxu0
        %1092 = vrot.lane.b32.xlu0 %v903, 48
        %v1093 = vpop.permute.xlu0 %1092
        %v1095 = vsel %vm929, %v1070, 0
        %v1098 = vsel %vm959, %v1093, 0
        %1100 = vmatpush.bf16.msra.mxu0 0
        %1101 = vmatpush.bf16.msra.mxu0 0
        %1102 = vmatpush.bf16.msra.mxu0 0
        %1103 = vmatpush.bf16.msra.mxu0 0
        %1104 = vmatpush.bf16.msra.mxu0 0
        %1105 = vmatpush.bf16.msra.mxu0 0
        %1106 = vmatpush.bf16.msra.mxu0 0
        %1107 = vmatpush.bf16.msra.mxu0 %v1098
        %1108 = vmatmul.bf16.gmra.mxu0 %v1095
        %v1109 = vpop.f32.mrf.mxu0
        %v1110 = vadd.f32 0.0, %v1109
        %v1111 = vpop.f32.mrf.mxu0
        %1112 = vdwg.mxu0
        %1115 = vrot.lane.b32.xlu0 %v1089, 16
        %v1116 = vpop.permute.xlu0 %1115
        %1117 = vrot.lane.b32.xlu0 %v1110, 16
        %v1118 = vpop.permute.xlu0 %1117
        %v1121 = vsel %vm881, %v973, %v1116
        %v1122 = vsel %vm881, %v994, %v1118
        %v1123 = vpack.c.bf16 %v1122, %v1121
        %v1124 = vld [vmem:[%s706] sm:$0xf]
        %v1125 = vld [vmem:[%s706 + $0x4] sm:$0xf]
        %v1126 = vld [vmem:[%s706 + $0x8] sm:$0xf]
        %v1127 = vld [vmem:[%s706 + $0xc] sm:$0xf]
        %v1128 = vld [vmem:[%s709] sm:$0x1]
        %v1130 = vperm.slane %v1128, 0
        %v1136 = vunpack.c.l.b16 %v1124
        %v1137 = vunpack.c.l.b16 %v1125
        %v1138 = vunpack.c.l.b16 %v1126
        %v1139 = vunpack.c.l.b16 %v1127
        %v1140 = vpack.c.b16 %v1137, %v1136
        %v1141 = vpack.c.b16 %v1139, %v1138
        %v1145 = vsel %vm856, %v1123, 0
        %1147 = vmatpush.bf16.msra.mxu0 0
        %1148 = vmatpush.bf16.msra.mxu0 0
        %1149 = vmatpush.bf16.msra.mxu0 0
        %1150 = vmatpush.bf16.msra.mxu0 0
        %1151 = vmatpush.bf16.msra.mxu0 0
        %1152 = vmatpush.bf16.msra.mxu0 0
        %1153 = vmatpush.bf16.msra.mxu0 %v1141
        %1154 = vmatpush.bf16.msra.mxu0 %v1140
        %1155 = vmatmul.bf16.gmra.mxu0 %v1145
        %v1156 = vpop.f32.mrf.mxu0
        %v1157 = vadd.f32 %v1130, %v1156
        %v1158 = vpop.f32.mrf.mxu0
        %v1159 = vadd.f32 %v1130, %v1158
        %1160 = vdwg.mxu0
        %v1161 = vadd.f32 %v1157, %v833
        %v1162 = vadd.f32 %v1159, %v834
        %v1163 = vld [vmem:[%s712] sm:$0x1]
        %v1164 = vld [vmem:[%s715] sm:$0x1]
        %v1165 = vsel %vm856, %v1161, 0.0
        %1166 = vadd.xlane.f32.xlu0 %v1165
        %v1167 = vpop.xlane.xlu0 %1166
        %v1168 = vsel %vm856, %v1162, 0.0
        %1169 = vadd.xlane.f32.xlu0 %v1168
        %v1170 = vpop.xlane.xlu0 %1169
        %v1171 = vrcp.pop 32.0
        %v1172 = vmul.f32 32.0, %v1171
        %v1173 = vsub.f32 1.0, %v1172
        %v1174 = vmul.f32 %v1171, %v1173
        %v1175 = vadd.f32 %v1171, %v1174
        %vm1176 = vweird.f32 %v1171
        %v1177 = vsel %vm1176, %v1171, %v1175
        %v1178 = vmul.f32 %v1167, %v1177
        %v1179 = vmul.f32 %v1170, %v1177
        %v1180 = vsub.f32 %v1161, %v1178
        %v1181 = vsub.f32 %v1162, %v1179
        %v1182 = vmul.f32 %v1180, %v1180
        %v1183 = vmul.f32 %v1181, %v1181
        %v1184 = vsel %vm856, %v1182, 0.0
        %1185 = vadd.xlane.f32.xlu0 %v1184
        %v1186 = vpop.xlane.xlu0 %1185
        %v1187 = vsel %vm856, %v1183, 0.0
        %1188 = vadd.xlane.f32.xlu0 %v1187
        %v1189 = vpop.xlane.xlu0 %1188
        %v1190 = vmul.f32 %v1186, %v1177
        %v1191 = vmul.f32 %v1189, %v1177
        %v1192 = vadd.f32 %v1190, 1e-12
        %v1193 = vadd.f32 %v1191, 1e-12
        %v1194 = vrsqrt.pop %v1192
        %v1195 = vmul.f32 %v1194, %v1192
        %v1196 = vmul.f32 %v1195, %v1194
        %v1197 = vmul.f32 0.5, %v1196
        %v1198 = vsub.f32 1.5, %v1197
        %v1199 = vmul.f32 %v1194, %v1198
        %vm1200 = vweird.f32 %v1192
        %vm1201 = vweird.f32 %v1194
        %vm1202 = vmor %vm1200, %vm1201
        %v1203 = vsel %vm1202, %v1194, %v1199
        %v1204 = vrsqrt.pop %v1193
        %v1205 = vmul.f32 %v1204, %v1193
        %v1206 = vmul.f32 %v1205, %v1204
        %v1207 = vmul.f32 0.5, %v1206
        %v1208 = vsub.f32 1.5, %v1207
        %v1209 = vmul.f32 %v1204, %v1208
        %vm1210 = vweird.f32 %v1193
        %vm1211 = vweird.f32 %v1204
        %vm1212 = vmor %vm1210, %vm1211
        %v1213 = vsel %vm1212, %v1204, %v1209
        %v1214 = vmul.f32 %v1180, %v1203
        %v1215 = vmul.f32 %v1181, %v1213
        %v1217 = vperm.slane %v1163, 0
        %v1219 = vmul.f32 %v1214, %v1217
        %v1220 = vmul.f32 %v1215, %v1217
        %v1222 = vperm.slane %v1164, 0
        %v1224 = vadd.f32 %v1219, %v1222
        %v1225 = vadd.f32 %v1220, %v1222
        %v1226 = vpack.c.bf16 %v1225, %v1224
        %v1227 = vld [vmem:[%s720] sm:$0xf]
        %v1228 = vld [vmem:[%s720 + $0x4] sm:$0xf]
        %v1229 = vld [vmem:[%s720 + $0x8] sm:$0xf]
        %v1230 = vld [vmem:[%s720 + $0xc] sm:$0xf]
        %v1231 = vld [vmem:[%s723] sm:$0x1]
        %v1233 = vperm.slane %v1231, 0
        %v1239 = vunpack.c.l.b16 %v1227
        %v1240 = vunpack.c.l.b16 %v1228
        %v1241 = vunpack.c.l.b16 %v1229
        %v1242 = vunpack.c.l.b16 %v1230
        %v1243 = vpack.c.b16 %v1240, %v1239
        %v1244 = vpack.c.b16 %v1242, %v1241
        %v1248 = vsel %vm856, %v1226, 0
        %1250 = vmatpush.bf16.msra.mxu0 0
        %1251 = vmatpush.bf16.msra.mxu0 0
        %1252 = vmatpush.bf16.msra.mxu0 0
        %1253 = vmatpush.bf16.msra.mxu0 0
        %1254 = vmatpush.bf16.msra.mxu0 0
        %1255 = vmatpush.bf16.msra.mxu0 0
        %1256 = vmatpush.bf16.msra.mxu0 %v1244
        %1257 = vmatpush.bf16.msra.mxu0 %v1243
        %1258 = vmatmul.bf16.gmra.mxu0 %v1248
        %v1259 = vpop.f32.mrf.mxu0
        %v1260 = vadd.f32 %v1233, %v1259
        %v1261 = vpop.f32.mrf.mxu0
        %v1262 = vadd.f32 %v1233, %v1261
        %1263 = vdwg.mxu0
        %v1264 = vmul.f32 %v1260, 0.5
        %v1265 = vmul.f32 %v1262, 0.5
        %v1266 = vrcp.pop 1.4142135
        %v1267 = vmul.f32 1.4142135, %v1266
        %v1268 = vsub.f32 1.0, %v1267
        %v1269 = vmul.f32 %v1266, %v1268
        %v1270 = vadd.f32 %v1266, %v1269
        %vm1271 = vweird.f32 %v1266
        %v1272 = vsel %vm1271, %v1266, %v1270
        %v1273 = vmul.f32 %v1260, %v1272
        %v1274 = vmul.f32 %v1262, %v1272
        %v1275 = vmul.f32 %v1273, %v1273
        %v1276 = vmin.f32 16.0, %v1275
        %v1277 = vmul.f32 %v1276, 2.1237322e-06
        %v1278 = vadd.f32 %v1277, 0.00028619796
        %v1279 = vmul.f32 %v1276, %v1278
        %v1280 = vadd.f32 %v1279, 0.0036580483
        %v1281 = vmul.f32 %v1276, %v1280
        %v1282 = vadd.f32 %v1281, 0.05243302
        %v1283 = vmul.f32 %v1276, %v1282
        %v1284 = vadd.f32 %v1283, 0.18741608
        %v1285 = vmul.f32 %v1276, %v1284
        %v1286 = vadd.f32 %v1285, 1.1283791
        %v1287 = vmul.f32 %v1273, %v1286
        %v1288 = vmul.f32 %v1276, 3.8918573e-05
        %v1289 = vadd.f32 %v1288, 0.001143296
        %v1290 = vmul.f32 %v1276, %v1289
        %v1291 = vadd.f32 %v1290, 0.014752088
        %v1292 = vmul.f32 %v1276, %v1291
        %v1293 = vadd.f32 %v1292, 0.112945676
        %v1294 = vmul.f32 %v1276, %v1293
        %v1295 = vadd.f32 %v1294, 0.4994258
        %v1296 = vmul.f32 %v1276, %v1295
        %v1297 = vadd.f32 %v1296, 1.0
        %v1298 = vrcp.pop %v1297
        %v1299 = vmul.f32 %v1297, %v1298
        %v1300 = vsub.f32 1.0, %v1299
        %v1301 = vmul.f32 %v1298, %v1300
        %v1302 = vadd.f32 %v1298, %v1301
        %vm1303 = vweird.f32 %v1297
        %vm1304 = vweird.f32 %v1298
        %vm1305 = vmor %vm1303, %vm1304
        %v1306 = vsel %vm1305, %v1298, %v1302
        %v1307 = vand.u32 2147483647, %v1297
        %vm1308 = vcmp.eq.f32.partialorder %v1307, 8.507059e+37
        %v1309 = vand.u32 %v1297, 2147483648
        %v1310 = vor.u32 1.1754944e-38, %v1309
        %v1311 = vsel %vm1308, %v1310, %v1306
        %v1312 = vmul.f32 %v1287, %v1311
        %v1313 = vmin.f32 %v1312, 1.0
        %v1314 = vmax.f32 %v1313, -1.0
        %v1315 = vmul.f32 %v1274, %v1274
        %v1316 = vmin.f32 16.0, %v1315
        %v1317 = vmul.f32 %v1316, 2.1237322e-06
        %v1318 = vadd.f32 %v1317, 0.00028619796
        %v1319 = vmul.f32 %v1316, %v1318
        %v1320 = vadd.f32 %v1319, 0.0036580483
        %v1321 = vmul.f32 %v1316, %v1320
        %v1322 = vadd.f32 %v1321, 0.05243302
        %v1323 = vmul.f32 %v1316, %v1322
        %v1324 = vadd.f32 %v1323, 0.18741608
        %v1325 = vmul.f32 %v1316, %v1324
        %v1326 = vadd.f32 %v1325, 1.1283791
        %v1327 = vmul.f32 %v1274, %v1326
        %v1328 = vmul.f32 %v1316, 3.8918573e-05
        %v1329 = vadd.f32 %v1328, 0.001143296
        %v1330 = vmul.f32 %v1316, %v1329
        %v1331 = vadd.f32 %v1330, 0.014752088
        %v1332 = vmul.f32 %v1316, %v1331
        %v1333 = vadd.f32 %v1332, 0.112945676
        %v1334 = vmul.f32 %v1316, %v1333
        %v1335 = vadd.f32 %v1334, 0.4994258
        %v1336 = vmul.f32 %v1316, %v1335
        %v1337 = vadd.f32 %v1336, 1.0
        %v1338 = vrcp.pop %v1337
        %v1339 = vmul.f32 %v1337, %v1338
        %v1340 = vsub.f32 1.0, %v1339
        %v1341 = vmul.f32 %v1338, %v1340
        %v1342 = vadd.f32 %v1338, %v1341
        %vm1343 = vweird.f32 %v1337
        %vm1344 = vweird.f32 %v1338
        %vm1345 = vmor %vm1343, %vm1344
        %v1346 = vsel %vm1345, %v1338, %v1342
        %v1347 = vand.u32 2147483647, %v1337
        %vm1348 = vcmp.eq.f32.partialorder %v1347, 8.507059e+37
        %v1349 = vand.u32 %v1337, 2147483648
        %v1350 = vor.u32 1.1754944e-38, %v1349
        %v1351 = vsel %vm1348, %v1350, %v1346
        %v1352 = vmul.f32 %v1327, %v1351
        %v1353 = vmin.f32 %v1352, 1.0
        %v1354 = vmax.f32 %v1353, -1.0
        %v1355 = vadd.f32 %v1314, 1.0
        %v1356 = vadd.f32 %v1354, 1.0
        %v1357 = vmul.f32 %v1264, %v1355
        %v1358 = vmul.f32 %v1265, %v1356
        %v1359 = vpack.c.bf16 %v1358, %v1357
        %v1360 = vld [vmem:[%s728] sm:$0xf]
        %v1361 = vld [vmem:[%s728 + $0x4] sm:$0xf]
        %v1362 = vld [vmem:[%s728 + $0x8] sm:$0xf]
        %v1363 = vld [vmem:[%s728 + $0xc] sm:$0xf]
        %v1364 = vld [vmem:[%s728 + $0x10] sm:$0xf]
        %v1365 = vld [vmem:[%s728 + $0x14] sm:$0xf]
        %v1366 = vld [vmem:[%s728 + $0x18] sm:$0xf]
        %v1367 = vld [vmem:[%s728 + $0x1c] sm:$0xf]
        %v1368 = vld [vmem:[%s728 + $0x20] sm:$0xf]
        %v1369 = vld [vmem:[%s728 + $0x24] sm:$0xf]
        %v1370 = vld [vmem:[%s728 + $0x28] sm:$0xf]
        %v1371 = vld [vmem:[%s728 + $0x2c] sm:$0xf]
        %v1372 = vld [vmem:[%s728 + $0x30] sm:$0xf]
        %v1373 = vld [vmem:[%s728 + $0x34] sm:$0xf]
        %v1374 = vld [vmem:[%s728 + $0x38] sm:$0xf]
        %v1375 = vld [vmem:[%s728 + $0x3c] sm:$0xf]
        %v1376 = vld [vmem:[%s731] sm:$0x1]
        %v1378 = vperm.slane %v1376, 0
        %v1396 = vunpack.c.l.b16 %v1360
        %v1397 = vunpack.c.l.b16 %v1361
        %v1398 = vunpack.c.l.b16 %v1362
        %v1399 = vunpack.c.l.b16 %v1363
        %v1400 = vunpack.c.l.b16 %v1364
        %v1401 = vunpack.c.l.b16 %v1365
        %v1402 = vunpack.c.l.b16 %v1366
        %v1403 = vunpack.c.l.b16 %v1367
        %v1404 = vunpack.c.l.b16 %v1368
        %v1405 = vunpack.c.l.b16 %v1369
        %v1406 = vunpack.c.l.b16 %v1370
        %v1407 = vunpack.c.l.b16 %v1371
        %v1408 = vunpack.c.l.b16 %v1372
        %v1409 = vunpack.c.l.b16 %v1373
        %v1410 = vunpack.c.l.b16 %v1374
        %v1411 = vunpack.c.l.b16 %v1375
        %v1412 = vpack.c.b16 %v1397, %v1396
        %v1413 = vpack.c.b16 %v1399, %v1398
        %v1414 = vpack.c.b16 %v1401, %v1400
        %v1415 = vpack.c.b16 %v1403, %v1402
        %v1416 = vpack.c.b16 %v1405, %v1404
        %v1417 = vpack.c.b16 %v1407, %v1406
        %v1418 = vpack.c.b16 %v1409, %v1408
        %v1419 = vpack.c.b16 %v1411, %v1410
        %1428 = vmatpush.bf16.msra.mxu0 %v1419
        %1429 = vmatpush.bf16.msra.mxu0 %v1418
        %1430 = vmatpush.bf16.msra.mxu0 %v1417
        %1431 = vmatpush.bf16.msra.mxu0 %v1416
        %1432 = vmatpush.bf16.msra.mxu0 %v1415
        %1433 = vmatpush.bf16.msra.mxu0 %v1414
        %1434 = vmatpush.bf16.msra.mxu0 %v1413
        %1435 = vmatpush.bf16.msra.mxu0 %v1412
        %1436 = vmatmul.bf16.gmra.mxu0 %v1359
        %v1437 = vpop.f32.mrf.mxu0
        %v1438 = vadd.f32 %v1378, %v1437
        %v1439 = vpop.f32.mrf.mxu0
        %v1440 = vadd.f32 %v1378, %v1439
        %1441 = vdwg.mxu0
        %v1442 = vadd.f32 %v1438, %v1224
        %v1443 = vadd.f32 %v1440, %v1225
        %v1444 = vld [vmem:[%s734] sm:$0x1]
        %v1445 = vld [vmem:[%s737] sm:$0x1]
        %v1446 = vsel %vm856, %v1442, 0.0
        %1447 = vadd.xlane.f32.xlu0 %v1446
        %v1448 = vpop.xlane.xlu0 %1447
        %v1449 = vsel %vm856, %v1443, 0.0
        %1450 = vadd.xlane.f32.xlu0 %v1449
        %v1451 = vpop.xlane.xlu0 %1450
        %v1452 = vmul.f32 %v1448, %v1177
        %v1453 = vmul.f32 %v1451, %v1177
        %v1454 = vsub.f32 %v1442, %v1452
        %v1455 = vsub.f32 %v1443, %v1453
        %v1456 = vmul.f32 %v1454, %v1454
        %v1457 = vmul.f32 %v1455, %v1455
        %v1458 = vsel %vm856, %v1456, 0.0
        %1459 = vadd.xlane.f32.xlu0 %v1458
        %v1460 = vpop.xlane.xlu0 %1459
        %v1461 = vsel %vm856, %v1457, 0.0
        %1462 = vadd.xlane.f32.xlu0 %v1461
        %v1463 = vpop.xlane.xlu0 %1462
        %v1464 = vmul.f32 %v1460, %v1177
        %v1465 = vmul.f32 %v1463, %v1177
        %v1466 = vadd.f32 %v1464, 1e-12
        %v1467 = vadd.f32 %v1465, 1e-12
        %v1468 = vrsqrt.pop %v1466
        %v1469 = vmul.f32 %v1468, %v1466
        %v1470 = vmul.f32 %v1469, %v1468
        %v1471 = vmul.f32 0.5, %v1470
        %v1472 = vsub.f32 1.5, %v1471
        %v1473 = vmul.f32 %v1468, %v1472
        %vm1474 = vweird.f32 %v1466
        %vm1475 = vweird.f32 %v1468
        %vm1476 = vmor %vm1474, %vm1475
        %v1477 = vsel %vm1476, %v1468, %v1473
        %v1478 = vrsqrt.pop %v1467
        %v1479 = vmul.f32 %v1478, %v1467
        %v1480 = vmul.f32 %v1479, %v1478
        %v1481 = vmul.f32 0.5, %v1480
        %v1482 = vsub.f32 1.5, %v1481
        %v1483 = vmul.f32 %v1478, %v1482
        %vm1484 = vweird.f32 %v1467
        %vm1485 = vweird.f32 %v1478
        %vm1486 = vmor %vm1484, %vm1485
        %v1487 = vsel %vm1486, %v1478, %v1483
        %v1488 = vmul.f32 %v1454, %v1477
        %v1489 = vmul.f32 %v1455, %v1487
        %v1491 = vperm.slane %v1444, 0
        %v1493 = vmul.f32 %v1488, %v1491
        %v1494 = vmul.f32 %v1489, %v1491
        %v1496 = vperm.slane %v1445, 0
        %v1498 = vadd.f32 %v1493, %v1496
        %v1499 = vadd.f32 %v1494, %v1496
        %1500 = vst.msk [vmem:[#allocation2] sm:$0xff] %vm856, %v1498
        %1501 = vst.msk [vmem:[#allocation2 + $0x8] sm:$0xff] %vm856, %v1499
        %p1502 = scmp.eq.s32.totalorder %s33, 1
        // Predicated region
        $region89: #{tpu_custom_call.1} parent=83 // pred_check
          %p1503 = pneg %p1502
        $region90: #{tpu_custom_call.1} parent=83 // pred_check_branch
          %1505 = sbr.rel (%p1503) target = $region92
        $region91: #{tpu_custom_call.1} parent=83 // pred_region
          %1506 = vst.msk [vmem:[#allocation3] sm:$0xff] %vm856, %v1498
          %1507 = vst.msk [vmem:[#allocation3 + $0x8] sm:$0xff] %vm856, %v1499
        $region92: #{tpu_custom_call.1} parent=83 // pred_fallthru
          _
        // Predicated region
        $region93: #{tpu_custom_call.1} parent=83 // pred_check
          %p1508 = pneg %p464
        $region94: #{tpu_custom_call.1} parent=83 // pred_check_branch
          %1510 = sbr.rel (%p1508) target = $region96
        $region95: #{tpu_custom_call.1} parent=83 // pred_region
          %s1511 = smul.u32 2, %s32
          %1513 = vsyncadd [#allocation4], 0
          %s1514 = smul.addr %s1511, 8
          %s1515 = scalar_lea.hbm %s16, %s1514
          %s1516 = sshll.u32 [#allocation3], 4
          %s1517 = int_to_ptr.vmem [resolvable:$true] %s1516
          %s1518 = sshll.u32 %s1515, 4
          %s1519 = int_to_ptr.hbm [resolvable:$true] %s1518
          %1524 = dma.vmem_to_hbm [thread:$0]  %s1517, 256, %s1519, [#allocation4], 128, 128, 8
        $region96: #{tpu_custom_call.1} parent=83 // pred_fallthru
          _
        // Predicated region
        $region97: #{tpu_custom_call.1} parent=83 // pred_check
          %p1525 = pneg %p464
        $region98: #{tpu_custom_call.1} parent=83 // pred_check_branch
          %1527 = sbr.rel (%p1525) target = $region100
        $region99: #{tpu_custom_call.1} parent=83 // pred_region
          %1529 = dma.done [#allocation4], 256
        $region100: #{tpu_custom_call.1} parent=83 // pred_fallthru
          _
      $region84: #{tpu_custom_call.1} parent=5 // pred_fallthru
        _
      %p1530 = scmp.le.s32.totalorder 2, %s23
      // Predicated region
      $region101: #{tpu_custom_call.1} parent=5 // pred_check
        %p1531 = pneg %p1530
      $region102: #{tpu_custom_call.1} parent=5 // pred_check_branch
        %1533 = sbr.rel (%p1531) target = $region104
      $region103: #{tpu_custom_call.1} parent=5 // pred_region
        %s1534 = ssub.s32 %s23, 2
      $region104: #{tpu_custom_call.1} parent=5 // pred_fallthru
        _
    $region6: #{tpu_custom_call.1} parent=1 // loop_footer
      %s27 = sadd.s32 1, %s23
    $region7: #{tpu_custom_call.1} parent=1 // loop_footer_branch
      %22 = sbr.rel target = $region3
    $region8: #{tpu_custom_call.1} parent=1 // loop_exit
      _
    %1535 = vsyncpa [#allocation4], 1
    %s1536 = scalar_lea.sflag [#allocation4], 1
    %1537 = vsyncpa %s1536, 1

</llo_original>
